<compile_context>
chip_gen: v6e
topology: v6e:2x2x1
jax: 0.10.0
libtpu: 0.0.40
codegen_flags: <defaults>
</compile_context>

<pallas_src>
import jax
import jax.numpy as jnp
from jax import lax
from jax.experimental import pallas as pl
from jax.experimental.pallas import tpu as pltpu


def _round_up(x, m):
    return ((x + m - 1) // m) * m


def _cdiv(a, b):
    return -(-a // b)


def _vmem_capacity_bytes():
    # 128 MiB on v5e/v6e, 64 MiB per TensorCore on v7x; conservative fallback.
    try:
        return int(pltpu.get_tpu_info().vmem_capacity_bytes)
    except Exception:
        return 64 << 20


def snde_forward(y0, t, w1, b1, w2, b2, gamma, *,
                 chunk_steps=None, batch_block=None, matmul_dtype=jnp.float32):
    f32 = jnp.float32
    B, D = y0.shape
    H = w1.shape[1]
    T = int(t.shape[0])

    # Lane/sublane-dense padding: batch -> multiple of 8 (sublanes),
    # feature / hidden dims -> multiples of 128 (lanes).
    Bp = _round_up(B, 8)
    Dp = _round_up(D, 128)
    Hp = _round_up(H, 128)

    y0p = jnp.pad(y0.astype(f32), ((0, Bp - B), (0, Dp - D)))
    w1p = jnp.pad(w1.astype(f32), ((0, Dp - D), (0, Hp - H)))
    b1p = jnp.pad(b1.astype(f32).reshape(1, H), ((0, 0), (0, Hp - H)))
    w2p = jnp.pad(w2.astype(f32), ((0, Hp - H), (0, Dp - D)))
    b2p = jnp.pad(b2.astype(f32).reshape(1, D), ((0, 0), (0, Dp - D)))

    # Constant dt, matching the PyTorch euler_ode_solver exactly (dt = t[1]-t[0], reused).
    dt = (t[1] - t[0]).astype(f32)
    # gamma * G^T (G G^T)^+ g  with g = 0.5*||y||^2, G = y  ==  0.5*gamma*y (0 at y==0),
    # so the Euler update folds to  y*decay + f_u*dt  with decay = 1 - 0.5*gamma*dt.
    decay = jnp.float32(1.0) - jnp.float32(0.5 * gamma) * dt
    scal = jnp.stack([dt, decay])  # -> SMEM: [dt, decay]

    # Batch blocking (one block by default; >1 only pays off on v7x's 2 TensorCores).
    BB = Bp if batch_block is None else _round_up(max(8, min(int(batch_block), Bp)), 8)
    nb = _cdiv(Bp, BB)
    Bp = nb * BB
    if Bp != y0p.shape[0]:
        y0p = jnp.pad(y0p, ((0, Bp - y0p.shape[0]), (0, 0)))

    # Time chunking: as many Euler steps per grid iteration as the per-generation VMEM
    # target allows, then equalize chunks so the padded tail wastes <= nc-1 serial steps.
    cap = _vmem_capacity_bytes()
    step_bytes = BB * Dp * 4
    if chunk_steps is None:
        target_block_bytes = max(1 << 20, cap // 16)  # ~8 MiB on v5e/v6e, ~4 MiB on v7x
        u_target = max(1, min(T, target_block_bytes // step_bytes))
    else:
        u_target = max(1, min(T, int(chunk_steps)))
    nc = _cdiv(T, u_target)
    U = _cdiv(T, nc)
    nc = _cdiv(T, U)
    Tp = nc * U
    unroll = True if U <= 16 else 16  # give the LLO scheduler visibility on the inner loop

    # Explicit VMEM budget: double-buffered output block + single-buffered invariant
    # inputs + carried-state scratch + slack (keeps v7x's 64 MiB honest, lets v5e/v6e
    # use larger chunks).
    in_bytes = (BB * Dp + Dp * Hp + Hp + Hp * Dp + Dp) * 4
    needed = 2 * U * BB * Dp * 4 + 2 * in_bytes + BB * Dp * 4 + (2 << 20)
    vmem_limit = int(min(max(needed, 16 << 20), cap - (4 << 20)))

    def kernel(scal_ref, y0_ref, w1_ref, b1_ref, w2_ref, b2_ref, out_ref, y_scr):
        # Load the initial state into the carried scratch on the first chunk of each
        # batch block only.
        @pl.when(pl.program_id(1) == 0)
        def _init():
            y_scr[...] = y0_ref[...]

        # Hoist all loop invariants: scalars, weights (optionally bf16), biases.
        dt_s = scal_ref[0]
        decay_s = scal_ref[1]
        w1v = w1_ref[...].astype(matmul_dtype)
        w2v = w2_ref[...].astype(matmul_dtype)
        b1v = b1_ref[...]  # (1, Hp): rely on implicit sublane broadcast in the add
        b2v = b2_ref[...]  # (1, Dp)

        def step(u, y):
            out_ref[u] = y                                   # ys[k] = y_k (store off the dep chain)
            ym = y.astype(matmul_dtype)
            h = jnp.tanh(jnp.dot(ym, w1v, preferred_element_type=jnp.float32) + b1v)
            f_u = jnp.dot(h.astype(matmul_dtype), w2v,
                          preferred_element_type=jnp.float32) + b2v
            return y * decay_s + f_u * dt_s                  # == y + (f_u - 0.5*gamma*y)*dt

        # State stays in vregs across the chunk; written back once for the next chunk.
        y_scr[...] = lax.fori_loop(0, U, step, y_scr[...], unroll=unroll)

    const1 = pl.Buffered(1)  # loop-invariant inputs: no pointless double buffer

    out = pl.pallas_call(
        kernel,
        out_shape=jax.ShapeDtypeStruct((Tp, Bp, Dp), f32),
        grid_spec=pltpu.PrefetchScalarGridSpec(
            num_scalar_prefetch=0,
            grid=(nb, nc),
            in_specs=[
                pl.BlockSpec(memory_space=pltpu.MemorySpace.SMEM),            # [dt, decay]
                pl.BlockSpec((BB, Dp), lambda b, c: (b, 0)),                  # y0 (per batch block)
                pl.BlockSpec((Dp, Hp), lambda b, c: (0, 0), pipeline_mode=const1),  # W1
                pl.BlockSpec((1, Hp), lambda b, c: (0, 0), pipeline_mode=const1),   # b1
                pl.BlockSpec((Hp, Dp), lambda b, c: (0, 0), pipeline_mode=const1),  # W2
                pl.BlockSpec((1, Dp), lambda b, c: (0, 0), pipeline_mode=const1),   # b2
            ],
            out_specs=pl.BlockSpec((U, BB, Dp), lambda b, c: (c, b, 0)),
            scratch_shapes=[pltpu.VMEM((BB, Dp), f32)],                       # carried state y_k
        ),
        compiler_params=pltpu.CompilerParams(
            # Time is a sequential chain (state carried across chunks); the leading
            # batch axis is independent and shards across v7x's 2 TCs when nb > 1.
            dimension_semantics=("parallel", "arbitrary"),
            vmem_limit_bytes=vmem_limit,
        ),
    )(scal, y0p, w1p, b1p, w2p, b2p)

    return out[:T, :B, :D]


def snde_reference(y0, t, w1, b1, w2, b2, gamma):
    """Pure-JAX reference mirroring the PyTorch code path exactly."""
    dt = t[1] - t[0]

    def f_model(_ti, u):
        return jnp.tanh(u @ w1 + b1) @ w2 + b2

    def dyn(ti, u):
        f_u = f_model(ti, u)
        g_u = 0.5 * jnp.sum(u * u, axis=-1)                   # (B,)
        G_u = u                                               # Jacobian of g wrt u
        gram = jnp.sum(G_u * G_u, axis=-1, keepdims=True)
        pinv = jnp.where(gram > 0.0, 1.0 / gram, 0.0)         # torch.pinverse of 1x1
        F_u = G_u * pinv
        stable = gamma * F_u * g_u[:, None]
        return f_u - stable

    ys = [y0]
    y = y0
    for i in range(t.shape[0] - 1):
        y = y + dyn(t[i], y) * dt
        ys.append(y)
    return jnp.stack(ys)


if __name__ == "__main__":
    D, H, T = 16, 32, 8
    gamma = 0.5

    key = jax.random.PRNGKey(0)
    k_y0, k_w1, k_b1, k_w2, k_b2 = jax.random.split(key, 5)

    w1 = 0.1 * jax.random.normal(k_w1, (D, H), dtype=jnp.float32)
    b1 = 0.1 * jax.random.normal(k_b1, (H,), dtype=jnp.float32)
    w2 = 0.1 * jax.random.normal(k_w2, (H, D), dtype=jnp.float32)
    b2 = 0.1 * jax.random.normal(k_b2, (D,), dtype=jnp.float32)
    t = jnp.linspace(0.0, 1.0, T, dtype=jnp.float32)

    # Case 1: default path (single chunk, single batch block).
    B = 2
    y0 = jax.random.normal(k_y0, (B, D), dtype=jnp.float32)
    out = jax.block_until_ready(snde_forward(y0, t, w1, b1, w2, b2, gamma))
    ref = snde_reference(y0, t, w1, b1, w2, b2, gamma)
    assert out.shape == (T, B, D), out.shape
    assert jnp.allclose(out, ref, atol=1e-3, rtol=1e-3), float(jnp.max(jnp.abs(out - ref)))

    # Case 2: exercise the multi-chunk carry and the batch-blocked (parallel-axis) path.
    B2 = 10
    y0b = jax.random.normal(k_y0, (B2, D), dtype=jnp.float32)
    out2 = jax.block_until_ready(
        snde_forward(y0b, t, w1, b1, w2, b2, gamma, chunk_steps=3, batch_block=8))
    ref2 = snde_reference(y0b, t, w1, b1, w2, b2, gamma)
    assert out2.shape == (T, B2, D), out2.shape
    assert jnp.allclose(out2, ref2, atol=1e-3, rtol=1e-3), float(jnp.max(jnp.abs(out2 - ref2)))

    print("KERNEL_OK")
</pallas_src>

<mosaic_0001>
module attributes {stable_mosaic.version = 11 : i64} {
  func.func @kernel(%arg0: i32, %arg1: i32, %arg2: memref<2xf32, #tpu.memory_space<smem>>, %arg3: memref<8x128xf32, #tpu.memory_space<vmem>>, %arg4: memref<128x128xf32, #tpu.memory_space<vmem>>, %arg5: memref<1x128xf32, #tpu.memory_space<vmem>>, %arg6: memref<128x128xf32, #tpu.memory_space<vmem>>, %arg7: memref<1x128xf32, #tpu.memory_space<vmem>>, %arg8: memref<8x8x128xf32, #tpu.memory_space<vmem>>, %arg9: memref<8x128xf32, #tpu.memory_space<vmem>>) attributes {dimension_semantics = [#tpu.dimension_semantics<parallel>, #tpu.dimension_semantics<arbitrary>], iteration_bounds = array<i64: 1, 1>, scalar_prefetch = 0 : i64, scratch_operands = 1 : i64, tpu.core_type = #tpu.core_type<tc>, window_params = [{transform_indices = @transform_0, window_bounds = array<i64: 2>}, {transform_indices = @transform_1, window_bounds = array<i64: 8, 128>}, {pipeline_mode = #tpu.pipeline_mode<synchronous>, transform_indices = @transform_2, window_bounds = array<i64: 128, 128>}, {pipeline_mode = #tpu.pipeline_mode<synchronous>, transform_indices = @transform_3, window_bounds = array<i64: 1, 128>}, {pipeline_mode = #tpu.pipeline_mode<synchronous>, transform_indices = @transform_4, window_bounds = array<i64: 128, 128>}, {pipeline_mode = #tpu.pipeline_mode<synchronous>, transform_indices = @transform_5, window_bounds = array<i64: 1, 128>}, {transform_indices = @transform_6, window_bounds = array<i64: 8, 8, 128>}]} {
    %c0_i32 = arith.constant 0 : i32
    %0 = arith.cmpi eq, %arg1, %c0_i32 : i32
    %1 = arith.extui %0 : i1 to i32
    %c0_i32_0 = arith.constant 0 : i32
    %2 = arith.cmpi ne, %1, %c0_i32_0 : i32
    scf.if %2 {
      %c0_45 = arith.constant 0 : index
      %c0_46 = arith.constant 0 : index
      %139 = vector.load %arg3[%c0_45, %c0_46] : memref<8x128xf32, #tpu.memory_space<vmem>>, vector<8x128xf32>
      %c0_47 = arith.constant 0 : index
      %c0_48 = arith.constant 0 : index
      %140 = vector.load %arg9[%c0_47, %c0_48] : memref<8x128xf32, #tpu.memory_space<vmem>>, vector<8x128xf32>
      tpu.vector_store %arg9[%c0_47, %c0_48], %139 {strides = array<i32>} : memref<8x128xf32, #tpu.memory_space<vmem>>, vector<8x128xf32>,
    } else {
    }
    %c0 = arith.constant 0 : index
    %3 = memref.load %arg2[%c0] : memref<2xf32, #tpu.memory_space<smem>>
    %c1 = arith.constant 1 : index
    %4 = memref.load %arg2[%c1] : memref<2xf32, #tpu.memory_space<smem>>
    %c0_1 = arith.constant 0 : index
    %c0_2 = arith.constant 0 : index
    %5 = vector.load %arg4[%c0_1, %c0_2] : memref<128x128xf32, #tpu.memory_space<vmem>>, vector<128x128xf32>
    %c0_3 = arith.constant 0 : index
    %c0_4 = arith.constant 0 : index
    %6 = vector.load %arg6[%c0_3, %c0_4] : memref<128x128xf32, #tpu.memory_space<vmem>>, vector<128x128xf32>
    %c0_5 = arith.constant 0 : index
    %c0_6 = arith.constant 0 : index
    %7 = vector.load %arg5[%c0_5, %c0_6] : memref<1x128xf32, #tpu.memory_space<vmem>>, vector<1x128xf32>
    %c0_7 = arith.constant 0 : index
    %c0_8 = arith.constant 0 : index
    %8 = vector.load %arg7[%c0_7, %c0_8] : memref<1x128xf32, #tpu.memory_space<vmem>>, vector<1x128xf32>
    %c0_9 = arith.constant 0 : index
    %c0_10 = arith.constant 0 : index
    %9 = vector.load %arg9[%c0_9, %c0_10] : memref<8x128xf32, #tpu.memory_space<vmem>>, vector<8x128xf32>
    %c0_i32_11 = arith.constant 0 : i32
    %10 = arith.index_cast %c0_i32_11 : i32 to index
    %c0_12 = arith.constant 0 : index
    %c0_13 = arith.constant 0 : index
    %11 = vector.load %arg8[%10, %c0_12, %c0_13] : memref<8x8x128xf32, #tpu.memory_space<vmem>>, vector<1x8x128xf32>
    %12 = vector.shape_cast %11 : vector<1x8x128xf32> to vector<8x128xf32>
    %13 = vector.shape_cast %9 : vector<8x128xf32> to vector<1x8x128xf32>
    tpu.vector_store %arg8[%10, %c0_12, %c0_13], %13 {strides = array<i32>} : memref<8x8x128xf32, #tpu.memory_space<vmem>>, vector<1x8x128xf32>,
    %cst = arith.constant dense<0.000000e+00> : vector<8x128xf32>
    %14 = tpu.matmul %9, %5, %cst {dimension_numbers = #tpu.dot_dimension_numbers<[1], [0], [0], [1], [0, 0, 1, 1], [], []>} : vector<8x128xf32>, vector<128x128xf32>, vector<8x128xf32> -> vector<8x128xf32>
    %15 = vector.broadcast %7 : vector<1x128xf32> to vector<8x128xf32>
    %16 = arith.addf %14, %15 : vector<8x128xf32>
    %17 = math.tanh %16 : vector<8x128xf32>
    %cst_14 = arith.constant dense<0.000000e+00> : vector<8x128xf32>
    %18 = tpu.matmul %17, %6, %cst_14 {dimension_numbers = #tpu.dot_dimension_numbers<[1], [0], [0], [1], [0, 0, 1, 1], [], []>} : vector<8x128xf32>, vector<128x128xf32>, vector<8x128xf32> -> vector<8x128xf32>
    %19 = vector.broadcast %8 : vector<1x128xf32> to vector<8x128xf32>
    %20 = arith.addf %18, %19 : vector<8x128xf32>
    %21 = vector.broadcast %4 : f32 to vector<8x128xf32>
    %22 = arith.mulf %9, %21 : vector<8x128xf32>
    %23 = vector.broadcast %3 : f32 to vector<8x128xf32>
    %24 = arith.mulf %20, %23 : vector<8x128xf32>
    %25 = arith.addf %22, %24 : vector<8x128xf32>
    %c1_i32 = arith.constant 1 : i32
    %26 = arith.index_cast %c1_i32 : i32 to index
    %c0_15 = arith.constant 0 : index
    %c0_16 = arith.constant 0 : index
    %27 = vector.load %arg8[%26, %c0_15, %c0_16] : memref<8x8x128xf32, #tpu.memory_space<vmem>>, vector<1x8x128xf32>
    %28 = vector.shape_cast %27 : vector<1x8x128xf32> to vector<8x128xf32>
    %29 = vector.shape_cast %25 : vector<8x128xf32> to vector<1x8x128xf32>
    tpu.vector_store %arg8[%26, %c0_15, %c0_16], %29 {strides = array<i32>} : memref<8x8x128xf32, #tpu.memory_space<vmem>>, vector<1x8x128xf32>,
    %cst_17 = arith.constant dense<0.000000e+00> : vector<8x128xf32>
    %30 = tpu.matmul %25, %5, %cst_17 {dimension_numbers = #tpu.dot_dimension_numbers<[1], [0], [0], [1], [0, 0, 1, 1], [], []>} : vector<8x128xf32>, vector<128x128xf32>, vector<8x128xf32> -> vector<8x128xf32>
    %31 = vector.broadcast %7 : vector<1x128xf32> to vector<8x128xf32>
    %32 = arith.addf %30, %31 : vector<8x128xf32>
    %33 = math.tanh %32 : vector<8x128xf32>
    %cst_18 = arith.constant dense<0.000000e+00> : vector<8x128xf32>
    %34 = tpu.matmul %33, %6, %cst_18 {dimension_numbers = #tpu.dot_dimension_numbers<[1], [0], [0], [1], [0, 0, 1, 1], [], []>} : vector<8x128xf32>, vector<128x128xf32>, vector<8x128xf32> -> vector<8x128xf32>
    %35 = vector.broadcast %8 : vector<1x128xf32> to vector<8x128xf32>
    %36 = arith.addf %34, %35 : vector<8x128xf32>
    %37 = vector.broadcast %4 : f32 to vector<8x128xf32>
    %38 = arith.mulf %25, %37 : vector<8x128xf32>
    %39 = vector.broadcast %3 : f32 to vector<8x128xf32>
    %40 = arith.mulf %36, %39 : vector<8x128xf32>
    %41 = arith.addf %38, %40 : vector<8x128xf32>
    %c2_i32 = arith.constant 2 : i32
    %42 = arith.index_cast %c2_i32 : i32 to index
    %c0_19 = arith.constant 0 : index
    %c0_20 = arith.constant 0 : index
    %43 = vector.load %arg8[%42, %c0_19, %c0_20] : memref<8x8x128xf32, #tpu.memory_space<vmem>>, vector<1x8x128xf32>
    %44 = vector.shape_cast %43 : vector<1x8x128xf32> to vector<8x128xf32>
    %45 = vector.shape_cast %41 : vector<8x128xf32> to vector<1x8x128xf32>
    tpu.vector_store %arg8[%42, %c0_19, %c0_20], %45 {strides = array<i32>} : memref<8x8x128xf32, #tpu.memory_space<vmem>>, vector<1x8x128xf32>,
    %cst_21 = arith.constant dense<0.000000e+00> : vector<8x128xf32>
    %46 = tpu.matmul %41, %5, %cst_21 {dimension_numbers = #tpu.dot_dimension_numbers<[1], [0], [0], [1], [0, 0, 1, 1], [], []>} : vector<8x128xf32>, vector<128x128xf32>, vector<8x128xf32> -> vector<8x128xf32>
    %47 = vector.broadcast %7 : vector<1x128xf32> to vector<8x128xf32>
    %48 = arith.addf %46, %47 : vector<8x128xf32>
    %49 = math.tanh %48 : vector<8x128xf32>
    %cst_22 = arith.constant dense<0.000000e+00> : vector<8x128xf32>
    %50 = tpu.matmul %49, %6, %cst_22 {dimension_numbers = #tpu.dot_dimension_numbers<[1], [0], [0], [1], [0, 0, 1, 1], [], []>} : vector<8x128xf32>, vector<128x128xf32>, vector<8x128xf32> -> vector<8x128xf32>
    %51 = vector.broadcast %8 : vector<1x128xf32> to vector<8x128xf32>
    %52 = arith.addf %50, %51 : vector<8x128xf32>
    %53 = vector.broadcast %4 : f32 to vector<8x128xf32>
    %54 = arith.mulf %41, %53 : vector<8x128xf32>
    %55 = vector.broadcast %3 : f32 to vector<8x128xf32>
    %56 = arith.mulf %52, %55 : vector<8x128xf32>
    %57 = arith.addf %54, %56 : vector<8x128xf32>
    %c3_i32 = arith.constant 3 : i32
    %58 = arith.index_cast %c3_i32 : i32 to index
    %c0_23 = arith.constant 0 : index
    %c0_24 = arith.constant 0 : index
    %59 = vector.load %arg8[%58, %c0_23, %c0_24] : memref<8x8x128xf32, #tpu.memory_space<vmem>>, vector<1x8x128xf32>
    %60 = vector.shape_cast %59 : vector<1x8x128xf32> to vector<8x128xf32>
    %61 = vector.shape_cast %57 : vector<8x128xf32> to vector<1x8x128xf32>
    tpu.vector_store %arg8[%58, %c0_23, %c0_24], %61 {strides = array<i32>} : memref<8x8x128xf32, #tpu.memory_space<vmem>>, vector<1x8x128xf32>,
    %cst_25 = arith.constant dense<0.000000e+00> : vector<8x128xf32>
    %62 = tpu.matmul %57, %5, %cst_25 {dimension_numbers = #tpu.dot_dimension_numbers<[1], [0], [0], [1], [0, 0, 1, 1], [], []>} : vector<8x128xf32>, vector<128x128xf32>, vector<8x128xf32> -> vector<8x128xf32>
    %63 = vector.broadcast %7 : vector<1x128xf32> to vector<8x128xf32>
    %64 = arith.addf %62, %63 : vector<8x128xf32>
    %65 = math.tanh %64 : vector<8x128xf32>
    %cst_26 = arith.constant dense<0.000000e+00> : vector<8x128xf32>
    %66 = tpu.matmul %65, %6, %cst_26 {dimension_numbers = #tpu.dot_dimension_numbers<[1], [0], [0], [1], [0, 0, 1, 1], [], []>} : vector<8x128xf32>, vector<128x128xf32>, vector<8x128xf32> -> vector<8x128xf32>
    %67 = vector.broadcast %8 : vector<1x128xf32> to vector<8x128xf32>
    %68 = arith.addf %66, %67 : vector<8x128xf32>
    %69 = vector.broadcast %4 : f32 to vector<8x128xf32>
    %70 = arith.mulf %57, %69 : vector<8x128xf32>
    %71 = vector.broadcast %3 : f32 to vector<8x128xf32>
    %72 = arith.mulf %68, %71 : vector<8x128xf32>
    %73 = arith.addf %70, %72 : vector<8x128xf32>
    %c4_i32 = arith.constant 4 : i32
    %74 = arith.index_cast %c4_i32 : i32 to index
    %c0_27 = arith.constant 0 : index
    %c0_28 = arith.constant 0 : index
    %75 = vector.load %arg8[%74, %c0_27, %c0_28] : memref<8x8x128xf32, #tpu.memory_space<vmem>>, vector<1x8x128xf32>
    %76 = vector.shape_cast %75 : vector<1x8x128xf32> to vector<8x128xf32>
    %77 = vector.shape_cast %73 : vector<8x128xf32> to vector<1x8x128xf32>
    tpu.vector_store %arg8[%74, %c0_27, %c0_28], %77 {strides = array<i32>} : memref<8x8x128xf32, #tpu.memory_space<vmem>>, vector<1x8x128xf32>,
    %cst_29 = arith.constant dense<0.000000e+00> : vector<8x128xf32>
    %78 = tpu.matmul %73, %5, %cst_29 {dimension_numbers = #tpu.dot_dimension_numbers<[1], [0], [0], [1], [0, 0, 1, 1], [], []>} : vector<8x128xf32>, vector<128x128xf32>, vector<8x128xf32> -> vector<8x128xf32>
    %79 = vector.broadcast %7 : vector<1x128xf32> to vector<8x128xf32>
    %80 = arith.addf %78, %79 : vector<8x128xf32>
    %81 = math.tanh %80 : vector<8x128xf32>
    %cst_30 = arith.constant dense<0.000000e+00> : vector<8x128xf32>
    %82 = tpu.matmul %81, %6, %cst_30 {dimension_numbers = #tpu.dot_dimension_numbers<[1], [0], [0], [1], [0, 0, 1, 1], [], []>} : vector<8x128xf32>, vector<128x128xf32>, vector<8x128xf32> -> vector<8x128xf32>
    %83 = vector.broadcast %8 : vector<1x128xf32> to vector<8x128xf32>
    %84 = arith.addf %82, %83 : vector<8x128xf32>
    %85 = vector.broadcast %4 : f32 to vector<8x128xf32>
    %86 = arith.mulf %73, %85 : vector<8x128xf32>
    %87 = vector.broadcast %3 : f32 to vector<8x128xf32>
    %88 = arith.mulf %84, %87 : vector<8x128xf32>
    %89 = arith.addf %86, %88 : vector<8x128xf32>
    %c5_i32 = arith.constant 5 : i32
    %90 = arith.index_cast %c5_i32 : i32 to index
    %c0_31 = arith.constant 0 : index
    %c0_32 = arith.constant 0 : index
    %91 = vector.load %arg8[%90, %c0_31, %c0_32] : memref<8x8x128xf32, #tpu.memory_space<vmem>>, vector<1x8x128xf32>
    %92 = vector.shape_cast %91 : vector<1x8x128xf32> to vector<8x128xf32>
    %93 = vector.shape_cast %89 : vector<8x128xf32> to vector<1x8x128xf32>
    tpu.vector_store %arg8[%90, %c0_31, %c0_32], %93 {strides = array<i32>} : memref<8x8x128xf32, #tpu.memory_space<vmem>>, vector<1x8x128xf32>,
    %cst_33 = arith.constant dense<0.000000e+00> : vector<8x128xf32>
    %94 = tpu.matmul %89, %5, %cst_33 {dimension_numbers = #tpu.dot_dimension_numbers<[1], [0], [0], [1], [0, 0, 1, 1], [], []>} : vector<8x128xf32>, vector<128x128xf32>, vector<8x128xf32> -> vector<8x128xf32>
    %95 = vector.broadcast %7 : vector<1x128xf32> to vector<8x128xf32>
    %96 = arith.addf %94, %95 : vector<8x128xf32>
    %97 = math.tanh %96 : vector<8x128xf32>
    %cst_34 = arith.constant dense<0.000000e+00> : vector<8x128xf32>
    %98 = tpu.matmul %97, %6, %cst_34 {dimension_numbers = #tpu.dot_dimension_numbers<[1], [0], [0], [1], [0, 0, 1, 1], [], []>} : vector<8x128xf32>, vector<128x128xf32>, vector<8x128xf32> -> vector<8x128xf32>
    %99 = vector.broadcast %8 : vector<1x128xf32> to vector<8x128xf32>
    %100 = arith.addf %98, %99 : vector<8x128xf32>
    %101 = vector.broadcast %4 : f32 to vector<8x128xf32>
    %102 = arith.mulf %89, %101 : vector<8x128xf32>
    %103 = vector.broadcast %3 : f32 to vector<8x128xf32>
    %104 = arith.mulf %100, %103 : vector<8x128xf32>
    %105 = arith.addf %102, %104 : vector<8x128xf32>
    %c6_i32 = arith.constant 6 : i32
    %106 = arith.index_cast %c6_i32 : i32 to index
    %c0_35 = arith.constant 0 : index
    %c0_36 = arith.constant 0 : index
    %107 = vector.load %arg8[%106, %c0_35, %c0_36] : memref<8x8x128xf32, #tpu.memory_space<vmem>>, vector<1x8x128xf32>
    %108 = vector.shape_cast %107 : vector<1x8x128xf32> to vector<8x128xf32>
    %109 = vector.shape_cast %105 : vector<8x128xf32> to vector<1x8x128xf32>
    tpu.vector_store %arg8[%106, %c0_35, %c0_36], %109 {strides = array<i32>} : memref<8x8x128xf32, #tpu.memory_space<vmem>>, vector<1x8x128xf32>,
    %cst_37 = arith.constant dense<0.000000e+00> : vector<8x128xf32>
    %110 = tpu.matmul %105, %5, %cst_37 {dimension_numbers = #tpu.dot_dimension_numbers<[1], [0], [0], [1], [0, 0, 1, 1], [], []>} : vector<8x128xf32>, vector<128x128xf32>, vector<8x128xf32> -> vector<8x128xf32>
    %111 = vector.broadcast %7 : vector<1x128xf32> to vector<8x128xf32>
    %112 = arith.addf %110, %111 : vector<8x128xf32>
    %113 = math.tanh %112 : vector<8x128xf32>
    %cst_38 = arith.constant dense<0.000000e+00> : vector<8x128xf32>
    %114 = tpu.matmul %113, %6, %cst_38 {dimension_numbers = #tpu.dot_dimension_numbers<[1], [0], [0], [1], [0, 0, 1, 1], [], []>} : vector<8x128xf32>, vector<128x128xf32>, vector<8x128xf32> -> vector<8x128xf32>
    %115 = vector.broadcast %8 : vector<1x128xf32> to vector<8x128xf32>
    %116 = arith.addf %114, %115 : vector<8x128xf32>
    %117 = vector.broadcast %4 : f32 to vector<8x128xf32>
    %118 = arith.mulf %105, %117 : vector<8x128xf32>
    %119 = vector.broadcast %3 : f32 to vector<8x128xf32>
    %120 = arith.mulf %116, %119 : vector<8x128xf32>
    %121 = arith.addf %118, %120 : vector<8x128xf32>
    %c7_i32 = arith.constant 7 : i32
    %122 = arith.index_cast %c7_i32 : i32 to index
    %c0_39 = arith.constant 0 : index
    %c0_40 = arith.constant 0 : index
    %123 = vector.load %arg8[%122, %c0_39, %c0_40] : memref<8x8x128xf32, #tpu.memory_space<vmem>>, vector<1x8x128xf32>
    %124 = vector.shape_cast %123 : vector<1x8x128xf32> to vector<8x128xf32>
    %125 = vector.shape_cast %121 : vector<8x128xf32> to vector<1x8x128xf32>
    tpu.vector_store %arg8[%122, %c0_39, %c0_40], %125 {strides = array<i32>} : memref<8x8x128xf32, #tpu.memory_space<vmem>>, vector<1x8x128xf32>,
    %cst_41 = arith.constant dense<0.000000e+00> : vector<8x128xf32>
    %126 = tpu.matmul %121, %5, %cst_41 {dimension_numbers = #tpu.dot_dimension_numbers<[1], [0], [0], [1], [0, 0, 1, 1], [], []>} : vector<8x128xf32>, vector<128x128xf32>, vector<8x128xf32> -> vector<8x128xf32>
    %127 = vector.broadcast %7 : vector<1x128xf32> to vector<8x128xf32>
    %128 = arith.addf %126, %127 : vector<8x128xf32>
    %129 = math.tanh %128 : vector<8x128xf32>
    %cst_42 = arith.constant dense<0.000000e+00> : vector<8x128xf32>
    %130 = tpu.matmul %129, %6, %cst_42 {dimension_numbers = #tpu.dot_dimension_numbers<[1], [0], [0], [1], [0, 0, 1, 1], [], []>} : vector<8x128xf32>, vector<128x128xf32>, vector<8x128xf32> -> vector<8x128xf32>
    %131 = vector.broadcast %8 : vector<1x128xf32> to vector<8x128xf32>
    %132 = arith.addf %130, %131 : vector<8x128xf32>
    %133 = vector.broadcast %4 : f32 to vector<8x128xf32>
    %134 = arith.mulf %121, %133 : vector<8x128xf32>
    %135 = vector.broadcast %3 : f32 to vector<8x128xf32>
    %136 = arith.mulf %132, %135 : vector<8x128xf32>
    %137 = arith.addf %134, %136 : vector<8x128xf32>
    %c8_i32 = arith.constant 8 : i32
    %c0_43 = arith.constant 0 : index
    %c0_44 = arith.constant 0 : index
    %138 = vector.load %arg9[%c0_43, %c0_44] : memref<8x128xf32, #tpu.memory_space<vmem>>, vector<8x128xf32>
    tpu.vector_store %arg9[%c0_43, %c0_44], %137 {strides = array<i32>} : memref<8x128xf32, #tpu.memory_space<vmem>>, vector<8x128xf32>,
    return
  }
  func.func @transform_0(%arg0: i32, %arg1: i32) -> i32 {
    %c0_i32 = arith.constant 0 : i32
    %c0_i32_0 = arith.constant 0 : i32
    return %c0_i32 : i32
  }
  func.func @transform_1(%arg0: i32, %arg1: i32) -> (i32, i32) {
    %c0_i32 = arith.constant 0 : i32
    %c0_i32_0 = arith.constant 0 : i32
    return %arg0, %c0_i32 : i32, i32
  }
  func.func @transform_2(%arg0: i32, %arg1: i32) -> (i32, i32) {
    %c0_i32 = arith.constant 0 : i32
    %c0_i32_0 = arith.constant 0 : i32
    %c0_i32_1 = arith.constant 0 : i32
    return %c0_i32, %c0_i32_0 : i32, i32
  }
  func.func @transform_3(%arg0: i32, %arg1: i32) -> (i32, i32) {
    %c0_i32 = arith.constant 0 : i32
    %c0_i32_0 = arith.constant 0 : i32
    %c0_i32_1 = arith.constant 0 : i32
    return %c0_i32, %c0_i32_0 : i32, i32
  }
  func.func @transform_4(%arg0: i32, %arg1: i32) -> (i32, i32) {
    %c0_i32 = arith.constant 0 : i32
    %c0_i32_0 = arith.constant 0 : i32
    %c0_i32_1 = arith.constant 0 : i32
    return %c0_i32, %c0_i32_0 : i32, i32
  }
  func.func @transform_5(%arg0: i32, %arg1: i32) -> (i32, i32) {
    %c0_i32 = arith.constant 0 : i32
    %c0_i32_0 = arith.constant 0 : i32
    %c0_i32_1 = arith.constant 0 : i32
    return %c0_i32, %c0_i32_0 : i32, i32
  }
  func.func @transform_6(%arg0: i32, %arg1: i32) -> (i32, i32, i32) {
    %c0_i32 = arith.constant 0 : i32
    %c0_i32_0 = arith.constant 0 : i32
    return %arg1, %arg0, %c0_i32 : i32, i32, i32
  }
}

</mosaic_0001>

<llo_original>
// kernel: tpu_custom_call.1
$region0: #{tpu_custom_call.1}
  #allocation0 [shape = 'u32[]', space=smem, size = 0x4, offset = 0x4, fixed_abs, tag = 'smem constant byte address 0x4 - core index']
  #allocation1 [shape = 'u32[144,128]{1,0:T(1,128)}', space=vmem, size = 0x12000, scoped, tag = 'internal scratch']
  #allocation2 [shape = 'f32[8,128]{1,0:T(8,128)}', space=vmem, size = 0x1000, scoped, tag = 'scratch operand']
  %s0 = inlined_call_operand.hbm [shape: f32[2], index: 0, kind: input, shape index: {}]
  %s1 = inlined_call_operand.hbm [shape: f32[8,128], index: 1, kind: input, shape index: {}]
  %s2 = inlined_call_operand.hbm [shape: f32[128,128], index: 2, kind: input, shape index: {}]
  %s3 = inlined_call_operand.vmem [shape: f32[1,128], index: 3, kind: input, shape index: {}]
  %s4 = inlined_call_operand.hbm [shape: f32[128,128], index: 4, kind: input, shape index: {}]
  %s5 = inlined_call_operand.vmem [shape: f32[1,128], index: 5, kind: input, shape index: {}]
  %s6 = inlined_call_operand.hbm [shape: f32[8,8,128], index: 6, kind: output, shape index: {}]
  %s7 = sld [smem:[#allocation0]]
  $region54: #{tpu_custom_call.1} parent=0
    _
  %s9 = ssub.s32 1, %s7
  %s10 = scalar_select 0, %s9, %s7
  $region1: #{tpu_custom_call.1} parent=0
    #allocation3 [shape = 'u8[512]{0}', space=smem, size = 0x200, scoped, tag = 'input window, operand 0, single buffered']
    #allocation4 [shape = 's32[1]{0}', space=sflag, size = 0x4, scoped, tag = 'scoped memory for tpu_custom_call.1']
    #allocation5 [shape = 's32[1]{0}', space=sflag, size = 0x4, scoped, tag = 'scoped memory for tpu_custom_call.1']
    #allocation6 [shape = 's32[1]{0}', space=sflag, size = 0x4, scoped, tag = 'scoped memory for tpu_custom_call.1']
    #allocation7 [shape = 'u8[4096]{0}', space=vmem, size = 0x1000, scoped, tag = 'input window, operand 1, single buffered']
    #allocation8 [shape = 'u8[65536]{0}', space=vmem, size = 0x10000, scoped, tag = 'input window, operand 2, single buffered']
    #allocation9 [shape = 's32[1]{0}', space=sflag, size = 0x4, scoped, tag = 'scoped memory for tpu_custom_call.1']
    #allocation10 [shape = 'u8[65536]{0}', space=vmem, size = 0x10000, scoped, tag = 'input window, operand 4, single buffered']
    #allocation11 [shape = 'u8[32768]{0}', space=vmem, size = 0x8000, scoped, tag = 'output window, operand 0, single buffered']
    %11 = vsyncpa [#allocation6], 0
    %12 = vsyncpa [#allocation4], 0
    %13 = vsyncpa [#allocation9], 0
    %14 = vsyncpa [#allocation5], 0
    // Predicated region
    $region2: #{tpu_custom_call.1} parent=1 // pred_check
      _
    $region3: #{tpu_custom_call.1} parent=1 // pred_check_branch
      %16 = sbr.rel (0) target = $region5
    $region4: #{tpu_custom_call.1} parent=1 // pred_region
      %s18 = ssub.s32 16, 16
      %19 = vsyncadd [#allocation6], %s18
      %22 = dma.hbm_to_smem %s0, 16, [#allocation3], [#allocation6]
    $region5: #{tpu_custom_call.1} parent=1 // pred_fallthru
      _
    // Predicated region
    $region6: #{tpu_custom_call.1} parent=1 // pred_check
      _
    $region7: #{tpu_custom_call.1} parent=1 // pred_check_branch
      %24 = sbr.rel (0) target = $region9
    $region8: #{tpu_custom_call.1} parent=1 // pred_region
      %s26 = ssub.s32 128, 128
      %27 = vsyncadd [#allocation4], %s26
      %s29 = sshll.u32 [#allocation7], 4
      %s30 = int_to_ptr.vmem [resolvable:$true] %s29
      %32 = dma.hbm_to_vmem [thread:$0]  %s1, 128, %s30, [#allocation4]
    $region9: #{tpu_custom_call.1} parent=1 // pred_fallthru
      _
    // Predicated region
    $region10: #{tpu_custom_call.1} parent=1 // pred_check
      _
    $region11: #{tpu_custom_call.1} parent=1 // pred_check_branch
      %34 = sbr.rel (0) target = $region13
    $region12: #{tpu_custom_call.1} parent=1 // pred_region
      %s36 = ssub.s32 2048, 2048
      %37 = vsyncadd [#allocation9], %s36
      %s38 = sshll.u32 [#allocation8], 4
      %s39 = int_to_ptr.vmem [resolvable:$true] %s38
      %44 = dma.hbm_to_vmem [thread:$0]  %s2, 2048, %s39, [#allocation9], 128, 128, 8
    $region13: #{tpu_custom_call.1} parent=1 // pred_fallthru
      _
    // Predicated region
    $region14: #{tpu_custom_call.1} parent=1 // pred_check
      _
    $region15: #{tpu_custom_call.1} parent=1 // pred_check_branch
      %46 = sbr.rel (0) target = $region17
    $region16: #{tpu_custom_call.1} parent=1 // pred_region
      _
    $region17: #{tpu_custom_call.1} parent=1 // pred_fallthru
      _
    // Predicated region
    $region18: #{tpu_custom_call.1} parent=1 // pred_check
      _
    $region19: #{tpu_custom_call.1} parent=1 // pred_check_branch
      %48 = sbr.rel (0) target = $region21
    $region20: #{tpu_custom_call.1} parent=1 // pred_region
      %s50 = ssub.s32 2048, 2048
      %51 = vsyncadd [#allocation9], %s50
      %s52 = sshll.u32 [#allocation10], 4
      %s53 = int_to_ptr.vmem [resolvable:$true] %s52
      %58 = dma.hbm_to_vmem [thread:$0]  %s4, 2048, %s53, [#allocation9], 128, 128, 8
    $region21: #{tpu_custom_call.1} parent=1 // pred_fallthru
      _
    // Predicated region
    $region22: #{tpu_custom_call.1} parent=1 // pred_check
      _
    $region23: #{tpu_custom_call.1} parent=1 // pred_check_branch
      %60 = sbr.rel (0) target = $region25
    $region24: #{tpu_custom_call.1} parent=1 // pred_region
      _
    $region25: #{tpu_custom_call.1} parent=1 // pred_fallthru
      _
    // Predicated region
    $region26: #{tpu_custom_call.1} parent=1 // pred_check
      _
    $region27: #{tpu_custom_call.1} parent=1 // pred_check_branch
      %62 = sbr.rel (0) target = $region29
    $region28: #{tpu_custom_call.1} parent=1 // pred_region
      %63 = dma.done [#allocation6], 16
    $region29: #{tpu_custom_call.1} parent=1 // pred_fallthru
      _
    // Predicated region
    $region30: #{tpu_custom_call.1} parent=1 // pred_check
      _
    $region31: #{tpu_custom_call.1} parent=1 // pred_check_branch
      %65 = sbr.rel (0) target = $region33
    $region32: #{tpu_custom_call.1} parent=1 // pred_region
      %66 = dma.done [#allocation4], 128
    $region33: #{tpu_custom_call.1} parent=1 // pred_fallthru
      _
    // Predicated region
    $region34: #{tpu_custom_call.1} parent=1 // pred_check
      _
    $region35: #{tpu_custom_call.1} parent=1 // pred_check_branch
      %68 = sbr.rel (0) target = $region37
    $region36: #{tpu_custom_call.1} parent=1 // pred_region
      %69 = dma.done [#allocation9], 2048
    $region37: #{tpu_custom_call.1} parent=1 // pred_fallthru
      _
    // Predicated region
    $region38: #{tpu_custom_call.1} parent=1 // pred_check
      _
    $region39: #{tpu_custom_call.1} parent=1 // pred_check_branch
      %71 = sbr.rel (0) target = $region41
    $region40: #{tpu_custom_call.1} parent=1 // pred_region
      %72 = dma.done [#allocation9], 2048
    $region41: #{tpu_custom_call.1} parent=1 // pred_fallthru
      _
    %73 = sfence
    %p74 = scmp.eq.s32.totalorder 0, 0
    // Predicated region
    $region42: #{tpu_custom_call.1} parent=1 // pred_check
      %p75 = pneg %p74
    $region43: #{tpu_custom_call.1} parent=1 // pred_check_branch
      %77 = sbr.rel (%p75) target = $region45
    $region44: #{tpu_custom_call.1} parent=1 // pred_region
      %v78 = vld [vmem:[#allocation7] sm:$0xff]
      %79 = vst [vmem:[#allocation2] sm:$0xff] %v78
    $region45: #{tpu_custom_call.1} parent=1 // pred_fallthru
      _
    %s80 = sld [smem:[#allocation3]]
    %s81 = sld [smem:[#allocation3 + $0x1]]
    %v82 = vld [vmem:[#allocation8] sm:$0xff]
    %v83 = vld [vmem:[#allocation8 + $0x8] sm:$0xff]
    %v84 = vld [vmem:[#allocation8 + $0x10] sm:$0xff]
    %v85 = vld [vmem:[#allocation8 + $0x18] sm:$0xff]
    %v86 = vld [vmem:[#allocation8 + $0x20] sm:$0xff]
    %v87 = vld [vmem:[#allocation8 + $0x28] sm:$0xff]
    %v88 = vld [vmem:[#allocation8 + $0x30] sm:$0xff]
    %v89 = vld [vmem:[#allocation8 + $0x38] sm:$0xff]
    %v90 = vld [vmem:[#allocation8 + $0x40] sm:$0xff]
    %v91 = vld [vmem:[#allocation8 + $0x48] sm:$0xff]
    %v92 = vld [vmem:[#allocation8 + $0x50] sm:$0xff]
    %v93 = vld [vmem:[#allocation8 + $0x58] sm:$0xff]
    %v94 = vld [vmem:[#allocation8 + $0x60] sm:$0xff]
    %v95 = vld [vmem:[#allocation8 + $0x68] sm:$0xff]
    %v96 = vld [vmem:[#allocation8 + $0x70] sm:$0xff]
    %v97 = vld [vmem:[#allocation8 + $0x78] sm:$0xff]
    %v98 = vld [vmem:[#allocation10] sm:$0xff]
    %v99 = vld [vmem:[#allocation10 + $0x8] sm:$0xff]
    %v100 = vld [vmem:[#allocation10 + $0x10] sm:$0xff]
    %v101 = vld [vmem:[#allocation10 + $0x18] sm:$0xff]
    %v102 = vld [vmem:[#allocation10 + $0x20] sm:$0xff]
    %v103 = vld [vmem:[#allocation10 + $0x28] sm:$0xff]
    %v104 = vld [vmem:[#allocation10 + $0x30] sm:$0xff]
    %v105 = vld [vmem:[#allocation10 + $0x38] sm:$0xff]
    %v106 = vld [vmem:[#allocation10 + $0x40] sm:$0xff]
    %v107 = vld [vmem:[#allocation10 + $0x48] sm:$0xff]
    %v108 = vld [vmem:[#allocation10 + $0x50] sm:$0xff]
    %v109 = vld [vmem:[#allocation10 + $0x58] sm:$0xff]
    %v110 = vld [vmem:[#allocation10 + $0x60] sm:$0xff]
    %v111 = vld [vmem:[#allocation10 + $0x68] sm:$0xff]
    %v112 = vld [vmem:[#allocation10 + $0x70] sm:$0xff]
    %v113 = vld [vmem:[#allocation10 + $0x78] sm:$0xff]
    %v114 = vld [vmem:[%s3] sm:$0x1]
    %v115 = vld [vmem:[%s5] sm:$0x1]
    %v116 = vld [vmem:[#allocation2] sm:$0xff]
    %117 = vst [vmem:[#allocation11] sm:$0xff] %v116
    %v119 = vlaneseq
    %v120 = vshrl.u32 %v119, 7
    %v121 = vsub.s32 0, %v120
    %v122 = vrot.slane %v114, %v121
    %124 = vmatprep.subr.mxu0 0.0
    %125 = vmatpush1.msra.mxu0 %v97
    %126 = vmatprep.subr.mxu0 0.0
    %127 = vmatpush1.msra.mxu0 %v96
    %128 = vmatprep.subr.mxu0 0.0
    %129 = vmatpush1.msra.mxu0 %v95
    %130 = vmatprep.subr.mxu0 0.0
    %131 = vmatpush1.msra.mxu0 %v94
    %132 = vmatprep.subr.mxu0 0.0
    %133 = vmatpush1.msra.mxu0 %v93
    %134 = vmatprep.subr.mxu0 0.0
    %135 = vmatpush1.msra.mxu0 %v92
    %136 = vmatprep.subr.mxu0 0.0
    %137 = vmatpush1.msra.mxu0 %v91
    %138 = vmatprep.subr.mxu0 0.0
    %139 = vmatpush1.msra.mxu0 %v90
    %140 = vmatprep.subr.mxu0 0.0
    %141 = vmatpush1.msra.mxu0 %v89
    %142 = vmatprep.subr.mxu0 0.0
    %143 = vmatpush1.msra.mxu0 %v88
    %144 = vmatprep.subr.mxu0 0.0
    %145 = vmatpush1.msra.mxu0 %v87
    %146 = vmatprep.subr.mxu0 0.0
    %147 = vmatpush1.msra.mxu0 %v86
    %148 = vmatprep.subr.mxu0 0.0
    %149 = vmatpush1.msra.mxu0 %v85
    %150 = vmatprep.subr.mxu0 0.0
    %151 = vmatpush1.msra.mxu0 %v84
    %152 = vmatprep.subr.mxu0 0.0
    %153 = vmatpush1.msra.mxu0 %v83
    %154 = vmatprep.subr.mxu0 0.0
    %155 = vmatpush1.msra.mxu0 %v82
    %156 = vmatprep.subr.mxu0 0.0
    %157 = vmatpush2.msra.mxu0 0.0
    %158 = vmatprep.subr.mxu0 0.0
    %159 = vmatpush2.msra.mxu0 0.0
    %160 = vmatprep.subr.mxu0 0.0
    %161 = vmatpush2.msra.mxu0 0.0
    %162 = vmatprep.subr.mxu0 0.0
    %163 = vmatpush2.msra.mxu0 0.0
    %164 = vmatprep.subr.mxu0 0.0
    %165 = vmatpush2.msra.mxu0 0.0
    %166 = vmatprep.subr.mxu0 0.0
    %167 = vmatpush2.msra.mxu0 0.0
    %168 = vmatprep.subr.mxu0 0.0
    %169 = vmatpush2.msra.mxu0 0.0
    %170 = vmatprep.subr.mxu0 0.0
    %171 = vmatpush2.msra.mxu0 0.0
    %172 = vmatprep.subr.mxu0 0.0
    %173 = vmatpush2.msra.mxu0 0.0
    %174 = vmatprep.subr.mxu0 0.0
    %175 = vmatpush2.msra.mxu0 0.0
    %176 = vmatprep.subr.mxu0 0.0
    %177 = vmatpush2.msra.mxu0 0.0
    %178 = vmatprep.subr.mxu0 0.0
    %179 = vmatpush2.msra.mxu0 0.0
    %180 = vmatprep.subr.mxu0 0.0
    %181 = vmatpush2.msra.mxu0 0.0
    %182 = vmatprep.subr.mxu0 0.0
    %183 = vmatpush2.msra.mxu0 0.0
    %184 = vmatprep.subr.mxu0 0.0
    %185 = vmatpush2.msra.mxu0 0.0
    %186 = vmatprep.subr.mxu0 0.0
    %187 = vmatpush2.msra.mxu0 0.0
    %188 = vmatprep.mubr.f32.mxu0 0.0
    %189 = vmatmul.mubr.f32.gmra.mxu0 %v116
    %v190 = vpop.f32.mrf.mxu0
    %v191 = vadd.f32 %v122, %v190
    %v192 = vpop.f32.mrf.mxu0
    %193 = vdwg.mxu0
    %v194 = vtanh.pop %v191
    %v196 = vlaneseq
    %v197 = vshrl.u32 %v196, 7
    %v198 = vsub.s32 0, %v197
    %v199 = vrot.slane %v115, %v198
    %201 = vmatprep.subr.mxu0 0.0
    %202 = vmatpush1.msra.mxu0 %v113
    %203 = vmatprep.subr.mxu0 0.0
    %204 = vmatpush1.msra.mxu0 %v112
    %205 = vmatprep.subr.mxu0 0.0
    %206 = vmatpush1.msra.mxu0 %v111
    %207 = vmatprep.subr.mxu0 0.0
    %208 = vmatpush1.msra.mxu0 %v110
    %209 = vmatprep.subr.mxu0 0.0
    %210 = vmatpush1.msra.mxu0 %v109
    %211 = vmatprep.subr.mxu0 0.0
    %212 = vmatpush1.msra.mxu0 %v108
    %213 = vmatprep.subr.mxu0 0.0
    %214 = vmatpush1.msra.mxu0 %v107
    %215 = vmatprep.subr.mxu0 0.0
    %216 = vmatpush1.msra.mxu0 %v106
    %217 = vmatprep.subr.mxu0 0.0
    %218 = vmatpush1.msra.mxu0 %v105
    %219 = vmatprep.subr.mxu0 0.0
    %220 = vmatpush1.msra.mxu0 %v104
    %221 = vmatprep.subr.mxu0 0.0
    %222 = vmatpush1.msra.mxu0 %v103
    %223 = vmatprep.subr.mxu0 0.0
    %224 = vmatpush1.msra.mxu0 %v102
    %225 = vmatprep.subr.mxu0 0.0
    %226 = vmatpush1.msra.mxu0 %v101
    %227 = vmatprep.subr.mxu0 0.0
    %228 = vmatpush1.msra.mxu0 %v100
    %229 = vmatprep.subr.mxu0 0.0
    %230 = vmatpush1.msra.mxu0 %v99
    %231 = vmatprep.subr.mxu0 0.0
    %232 = vmatpush1.msra.mxu0 %v98
    %233 = vmatprep.subr.mxu0 0.0
    %234 = vmatpush2.msra.mxu0 0.0
    %235 = vmatprep.subr.mxu0 0.0
    %236 = vmatpush2.msra.mxu0 0.0
    %237 = vmatprep.subr.mxu0 0.0
    %238 = vmatpush2.msra.mxu0 0.0
    %239 = vmatprep.subr.mxu0 0.0
    %240 = vmatpush2.msra.mxu0 0.0
    %241 = vmatprep.subr.mxu0 0.0
    %242 = vmatpush2.msra.mxu0 0.0
    %243 = vmatprep.subr.mxu0 0.0
    %244 = vmatpush2.msra.mxu0 0.0
    %245 = vmatprep.subr.mxu0 0.0
    %246 = vmatpush2.msra.mxu0 0.0
    %247 = vmatprep.subr.mxu0 0.0
    %248 = vmatpush2.msra.mxu0 0.0
    %249 = vmatprep.subr.mxu0 0.0
    %250 = vmatpush2.msra.mxu0 0.0
    %251 = vmatprep.subr.mxu0 0.0
    %252 = vmatpush2.msra.mxu0 0.0
    %253 = vmatprep.subr.mxu0 0.0
    %254 = vmatpush2.msra.mxu0 0.0
    %255 = vmatprep.subr.mxu0 0.0
    %256 = vmatpush2.msra.mxu0 0.0
    %257 = vmatprep.subr.mxu0 0.0
    %258 = vmatpush2.msra.mxu0 0.0
    %259 = vmatprep.subr.mxu0 0.0
    %260 = vmatpush2.msra.mxu0 0.0
    %261 = vmatprep.subr.mxu0 0.0
    %262 = vmatpush2.msra.mxu0 0.0
    %263 = vmatprep.subr.mxu0 0.0
    %264 = vmatpush2.msra.mxu0 0.0
    %265 = vmatprep.mubr.f32.mxu0 0.0
    %266 = vmatmul.mubr.f32.gmra.mxu0 %v194
    %v267 = vpop.f32.mrf.mxu0
    %v268 = vadd.f32 %v199, %v267
    %v269 = vpop.f32.mrf.mxu0
    %270 = vdwg.mxu0
    %v271 = vstv %s81
    %v272 = vmul.f32 %v116, %v271
    %v273 = vstv %s80
    %v274 = vmul.f32 %v268, %v273
    %v275 = vadd.f32 %v272, %v274
    %s276 = scalar_lea.vmem [#allocation11], 8
    %277 = vst [vmem:[%s276] sm:$0xff] %v275
    %278 = vmatprep.subr.mxu0 0.0
    %279 = vmatpush1.msra.mxu0 %v97
    %280 = vmatprep.subr.mxu0 0.0
    %281 = vmatpush1.msra.mxu0 %v96
    %282 = vmatprep.subr.mxu0 0.0
    %283 = vmatpush1.msra.mxu0 %v95
    %284 = vmatprep.subr.mxu0 0.0
    %285 = vmatpush1.msra.mxu0 %v94
    %286 = vmatprep.subr.mxu0 0.0
    %287 = vmatpush1.msra.mxu0 %v93
    %288 = vmatprep.subr.mxu0 0.0
    %289 = vmatpush1.msra.mxu0 %v92
    %290 = vmatprep.subr.mxu0 0.0
    %291 = vmatpush1.msra.mxu0 %v91
    %292 = vmatprep.subr.mxu0 0.0
    %293 = vmatpush1.msra.mxu0 %v90
    %294 = vmatprep.subr.mxu0 0.0
    %295 = vmatpush1.msra.mxu0 %v89
    %296 = vmatprep.subr.mxu0 0.0
    %297 = vmatpush1.msra.mxu0 %v88
    %298 = vmatprep.subr.mxu0 0.0
    %299 = vmatpush1.msra.mxu0 %v87
    %300 = vmatprep.subr.mxu0 0.0
    %301 = vmatpush1.msra.mxu0 %v86
    %302 = vmatprep.subr.mxu0 0.0
    %303 = vmatpush1.msra.mxu0 %v85
    %304 = vmatprep.subr.mxu0 0.0
    %305 = vmatpush1.msra.mxu0 %v84
    %306 = vmatprep.subr.mxu0 0.0
    %307 = vmatpush1.msra.mxu0 %v83
    %308 = vmatprep.subr.mxu0 0.0
    %309 = vmatpush1.msra.mxu0 %v82
    %310 = vmatprep.subr.mxu0 0.0
    %311 = vmatpush2.msra.mxu0 0.0
    %312 = vmatprep.subr.mxu0 0.0
    %313 = vmatpush2.msra.mxu0 0.0
    %314 = vmatprep.subr.mxu0 0.0
    %315 = vmatpush2.msra.mxu0 0.0
    %316 = vmatprep.subr.mxu0 0.0
    %317 = vmatpush2.msra.mxu0 0.0
    %318 = vmatprep.subr.mxu0 0.0
    %319 = vmatpush2.msra.mxu0 0.0
    %320 = vmatprep.subr.mxu0 0.0
    %321 = vmatpush2.msra.mxu0 0.0
    %322 = vmatprep.subr.mxu0 0.0
    %323 = vmatpush2.msra.mxu0 0.0
    %324 = vmatprep.subr.mxu0 0.0
    %325 = vmatpush2.msra.mxu0 0.0
    %326 = vmatprep.subr.mxu0 0.0
    %327 = vmatpush2.msra.mxu0 0.0
    %328 = vmatprep.subr.mxu0 0.0
    %329 = vmatpush2.msra.mxu0 0.0
    %330 = vmatprep.subr.mxu0 0.0
    %331 = vmatpush2.msra.mxu0 0.0
    %332 = vmatprep.subr.mxu0 0.0
    %333 = vmatpush2.msra.mxu0 0.0
    %334 = vmatprep.subr.mxu0 0.0
    %335 = vmatpush2.msra.mxu0 0.0
    %336 = vmatprep.subr.mxu0 0.0
    %337 = vmatpush2.msra.mxu0 0.0
    %338 = vmatprep.subr.mxu0 0.0
    %339 = vmatpush2.msra.mxu0 0.0
    %340 = vmatprep.subr.mxu0 0.0
    %341 = vmatpush2.msra.mxu0 0.0
    %342 = vmatprep.mubr.f32.mxu0 0.0
    %343 = vmatmul.mubr.f32.gmra.mxu0 %v275
    %v344 = vpop.f32.mrf.mxu0
    %v345 = vadd.f32 %v122, %v344
    %v346 = vpop.f32.mrf.mxu0
    %347 = vdwg.mxu0
    %v348 = vtanh.pop %v345
    %349 = vmatprep.subr.mxu0 0.0
    %350 = vmatpush1.msra.mxu0 %v113
    %351 = vmatprep.subr.mxu0 0.0
    %352 = vmatpush1.msra.mxu0 %v112
    %353 = vmatprep.subr.mxu0 0.0
    %354 = vmatpush1.msra.mxu0 %v111
    %355 = vmatprep.subr.mxu0 0.0
    %356 = vmatpush1.msra.mxu0 %v110
    %357 = vmatprep.subr.mxu0 0.0
    %358 = vmatpush1.msra.mxu0 %v109
    %359 = vmatprep.subr.mxu0 0.0
    %360 = vmatpush1.msra.mxu0 %v108
    %361 = vmatprep.subr.mxu0 0.0
    %362 = vmatpush1.msra.mxu0 %v107
    %363 = vmatprep.subr.mxu0 0.0
    %364 = vmatpush1.msra.mxu0 %v106
    %365 = vmatprep.subr.mxu0 0.0
    %366 = vmatpush1.msra.mxu0 %v105
    %367 = vmatprep.subr.mxu0 0.0
    %368 = vmatpush1.msra.mxu0 %v104
    %369 = vmatprep.subr.mxu0 0.0
    %370 = vmatpush1.msra.mxu0 %v103
    %371 = vmatprep.subr.mxu0 0.0
    %372 = vmatpush1.msra.mxu0 %v102
    %373 = vmatprep.subr.mxu0 0.0
    %374 = vmatpush1.msra.mxu0 %v101
    %375 = vmatprep.subr.mxu0 0.0
    %376 = vmatpush1.msra.mxu0 %v100
    %377 = vmatprep.subr.mxu0 0.0
    %378 = vmatpush1.msra.mxu0 %v99
    %379 = vmatprep.subr.mxu0 0.0
    %380 = vmatpush1.msra.mxu0 %v98
    %381 = vmatprep.subr.mxu0 0.0
    %382 = vmatpush2.msra.mxu0 0.0
    %383 = vmatprep.subr.mxu0 0.0
    %384 = vmatpush2.msra.mxu0 0.0
    %385 = vmatprep.subr.mxu0 0.0
    %386 = vmatpush2.msra.mxu0 0.0
    %387 = vmatprep.subr.mxu0 0.0
    %388 = vmatpush2.msra.mxu0 0.0
    %389 = vmatprep.subr.mxu0 0.0
    %390 = vmatpush2.msra.mxu0 0.0
    %391 = vmatprep.subr.mxu0 0.0
    %392 = vmatpush2.msra.mxu0 0.0
    %393 = vmatprep.subr.mxu0 0.0
    %394 = vmatpush2.msra.mxu0 0.0
    %395 = vmatprep.subr.mxu0 0.0
    %396 = vmatpush2.msra.mxu0 0.0
    %397 = vmatprep.subr.mxu0 0.0
    %398 = vmatpush2.msra.mxu0 0.0
    %399 = vmatprep.subr.mxu0 0.0
    %400 = vmatpush2.msra.mxu0 0.0
    %401 = vmatprep.subr.mxu0 0.0
    %402 = vmatpush2.msra.mxu0 0.0
    %403 = vmatprep.subr.mxu0 0.0
    %404 = vmatpush2.msra.mxu0 0.0
    %405 = vmatprep.subr.mxu0 0.0
    %406 = vmatpush2.msra.mxu0 0.0
    %407 = vmatprep.subr.mxu0 0.0
    %408 = vmatpush2.msra.mxu0 0.0
    %409 = vmatprep.subr.mxu0 0.0
    %410 = vmatpush2.msra.mxu0 0.0
    %411 = vmatprep.subr.mxu0 0.0
    %412 = vmatpush2.msra.mxu0 0.0
    %413 = vmatprep.mubr.f32.mxu0 0.0
    %414 = vmatmul.mubr.f32.gmra.mxu0 %v348
    %v415 = vpop.f32.mrf.mxu0
    %v416 = vadd.f32 %v199, %v415
    %v417 = vpop.f32.mrf.mxu0
    %418 = vdwg.mxu0
    %v419 = vmul.f32 %v275, %v271
    %v420 = vmul.f32 %v416, %v273
    %v421 = vadd.f32 %v419, %v420
    %s422 = scalar_lea.vmem [#allocation11], 16
    %423 = vst [vmem:[%s422] sm:$0xff] %v421
    %424 = vmatprep.subr.mxu0 0.0
    %425 = vmatpush1.msra.mxu0 %v97
    %426 = vmatprep.subr.mxu0 0.0
    %427 = vmatpush1.msra.mxu0 %v96
    %428 = vmatprep.subr.mxu0 0.0
    %429 = vmatpush1.msra.mxu0 %v95
    %430 = vmatprep.subr.mxu0 0.0
    %431 = vmatpush1.msra.mxu0 %v94
    %432 = vmatprep.subr.mxu0 0.0
    %433 = vmatpush1.msra.mxu0 %v93
    %434 = vmatprep.subr.mxu0 0.0
    %435 = vmatpush1.msra.mxu0 %v92
    %436 = vmatprep.subr.mxu0 0.0
    %437 = vmatpush1.msra.mxu0 %v91
    %438 = vmatprep.subr.mxu0 0.0
    %439 = vmatpush1.msra.mxu0 %v90
    %440 = vmatprep.subr.mxu0 0.0
    %441 = vmatpush1.msra.mxu0 %v89
    %442 = vmatprep.subr.mxu0 0.0
    %443 = vmatpush1.msra.mxu0 %v88
    %444 = vmatprep.subr.mxu0 0.0
    %445 = vmatpush1.msra.mxu0 %v87
    %446 = vmatprep.subr.mxu0 0.0
    %447 = vmatpush1.msra.mxu0 %v86
    %448 = vmatprep.subr.mxu0 0.0
    %449 = vmatpush1.msra.mxu0 %v85
    %450 = vmatprep.subr.mxu0 0.0
    %451 = vmatpush1.msra.mxu0 %v84
    %452 = vmatprep.subr.mxu0 0.0
    %453 = vmatpush1.msra.mxu0 %v83
    %454 = vmatprep.subr.mxu0 0.0
    %455 = vmatpush1.msra.mxu0 %v82
    %456 = vmatprep.subr.mxu0 0.0
    %457 = vmatpush2.msra.mxu0 0.0
    %458 = vmatprep.subr.mxu0 0.0
    %459 = vmatpush2.msra.mxu0 0.0
    %460 = vmatprep.subr.mxu0 0.0
    %461 = vmatpush2.msra.mxu0 0.0
    %462 = vmatprep.subr.mxu0 0.0
    %463 = vmatpush2.msra.mxu0 0.0
    %464 = vmatprep.subr.mxu0 0.0
    %465 = vmatpush2.msra.mxu0 0.0
    %466 = vmatprep.subr.mxu0 0.0
    %467 = vmatpush2.msra.mxu0 0.0
    %468 = vmatprep.subr.mxu0 0.0
    %469 = vmatpush2.msra.mxu0 0.0
    %470 = vmatprep.subr.mxu0 0.0
    %471 = vmatpush2.msra.mxu0 0.0
    %472 = vmatprep.subr.mxu0 0.0
    %473 = vmatpush2.msra.mxu0 0.0
    %474 = vmatprep.subr.mxu0 0.0
    %475 = vmatpush2.msra.mxu0 0.0
    %476 = vmatprep.subr.mxu0 0.0
    %477 = vmatpush2.msra.mxu0 0.0
    %478 = vmatprep.subr.mxu0 0.0
    %479 = vmatpush2.msra.mxu0 0.0
    %480 = vmatprep.subr.mxu0 0.0
    %481 = vmatpush2.msra.mxu0 0.0
    %482 = vmatprep.subr.mxu0 0.0
    %483 = vmatpush2.msra.mxu0 0.0
    %484 = vmatprep.subr.mxu0 0.0
    %485 = vmatpush2.msra.mxu0 0.0
    %486 = vmatprep.subr.mxu0 0.0
    %487 = vmatpush2.msra.mxu0 0.0
    %488 = vmatprep.mubr.f32.mxu0 0.0
    %489 = vmatmul.mubr.f32.gmra.mxu0 %v421
    %v490 = vpop.f32.mrf.mxu0
    %v491 = vadd.f32 %v122, %v490
    %v492 = vpop.f32.mrf.mxu0
    %493 = vdwg.mxu0
    %v494 = vtanh.pop %v491
    %495 = vmatprep.subr.mxu0 0.0
    %496 = vmatpush1.msra.mxu0 %v113
    %497 = vmatprep.subr.mxu0 0.0
    %498 = vmatpush1.msra.mxu0 %v112
    %499 = vmatprep.subr.mxu0 0.0
    %500 = vmatpush1.msra.mxu0 %v111
    %501 = vmatprep.subr.mxu0 0.0
    %502 = vmatpush1.msra.mxu0 %v110
    %503 = vmatprep.subr.mxu0 0.0
    %504 = vmatpush1.msra.mxu0 %v109
    %505 = vmatprep.subr.mxu0 0.0
    %506 = vmatpush1.msra.mxu0 %v108
    %507 = vmatprep.subr.mxu0 0.0
    %508 = vmatpush1.msra.mxu0 %v107
    %509 = vmatprep.subr.mxu0 0.0
    %510 = vmatpush1.msra.mxu0 %v106
    %511 = vmatprep.subr.mxu0 0.0
    %512 = vmatpush1.msra.mxu0 %v105
    %513 = vmatprep.subr.mxu0 0.0
    %514 = vmatpush1.msra.mxu0 %v104
    %515 = vmatprep.subr.mxu0 0.0
    %516 = vmatpush1.msra.mxu0 %v103
    %517 = vmatprep.subr.mxu0 0.0
    %518 = vmatpush1.msra.mxu0 %v102
    %519 = vmatprep.subr.mxu0 0.0
    %520 = vmatpush1.msra.mxu0 %v101
    %521 = vmatprep.subr.mxu0 0.0
    %522 = vmatpush1.msra.mxu0 %v100
    %523 = vmatprep.subr.mxu0 0.0
    %524 = vmatpush1.msra.mxu0 %v99
    %525 = vmatprep.subr.mxu0 0.0
    %526 = vmatpush1.msra.mxu0 %v98
    %527 = vmatprep.subr.mxu0 0.0
    %528 = vmatpush2.msra.mxu0 0.0
    %529 = vmatprep.subr.mxu0 0.0
    %530 = vmatpush2.msra.mxu0 0.0
    %531 = vmatprep.subr.mxu0 0.0
    %532 = vmatpush2.msra.mxu0 0.0
    %533 = vmatprep.subr.mxu0 0.0
    %534 = vmatpush2.msra.mxu0 0.0
    %535 = vmatprep.subr.mxu0 0.0
    %536 = vmatpush2.msra.mxu0 0.0
    %537 = vmatprep.subr.mxu0 0.0
    %538 = vmatpush2.msra.mxu0 0.0
    %539 = vmatprep.subr.mxu0 0.0
    %540 = vmatpush2.msra.mxu0 0.0
    %541 = vmatprep.subr.mxu0 0.0
    %542 = vmatpush2.msra.mxu0 0.0
    %543 = vmatprep.subr.mxu0 0.0
    %544 = vmatpush2.msra.mxu0 0.0
    %545 = vmatprep.subr.mxu0 0.0
    %546 = vmatpush2.msra.mxu0 0.0
    %547 = vmatprep.subr.mxu0 0.0
    %548 = vmatpush2.msra.mxu0 0.0
    %549 = vmatprep.subr.mxu0 0.0
    %550 = vmatpush2.msra.mxu0 0.0
    %551 = vmatprep.subr.mxu0 0.0
    %552 = vmatpush2.msra.mxu0 0.0
    %553 = vmatprep.subr.mxu0 0.0
    %554 = vmatpush2.msra.mxu0 0.0
    %555 = vmatprep.subr.mxu0 0.0
    %556 = vmatpush2.msra.mxu0 0.0
    %557 = vmatprep.subr.mxu0 0.0
    %558 = vmatpush2.msra.mxu0 0.0
    %559 = vmatprep.mubr.f32.mxu0 0.0
    %560 = vmatmul.mubr.f32.gmra.mxu0 %v494
    %v561 = vpop.f32.mrf.mxu0
    %v562 = vadd.f32 %v199, %v561
    %v563 = vpop.f32.mrf.mxu0
    %564 = vdwg.mxu0
    %v565 = vmul.f32 %v421, %v271
    %v566 = vmul.f32 %v562, %v273
    %v567 = vadd.f32 %v565, %v566
    %s568 = scalar_lea.vmem [#allocation11], 24
    %569 = vst [vmem:[%s568] sm:$0xff] %v567
    %570 = vmatprep.subr.mxu0 0.0
    %571 = vmatpush1.msra.mxu0 %v97
    %572 = vmatprep.subr.mxu0 0.0
    %573 = vmatpush1.msra.mxu0 %v96
    %574 = vmatprep.subr.mxu0 0.0
    %575 = vmatpush1.msra.mxu0 %v95
    %576 = vmatprep.subr.mxu0 0.0
    %577 = vmatpush1.msra.mxu0 %v94
    %578 = vmatprep.subr.mxu0 0.0
    %579 = vmatpush1.msra.mxu0 %v93
    %580 = vmatprep.subr.mxu0 0.0
    %581 = vmatpush1.msra.mxu0 %v92
    %582 = vmatprep.subr.mxu0 0.0
    %583 = vmatpush1.msra.mxu0 %v91
    %584 = vmatprep.subr.mxu0 0.0
    %585 = vmatpush1.msra.mxu0 %v90
    %586 = vmatprep.subr.mxu0 0.0
    %587 = vmatpush1.msra.mxu0 %v89
    %588 = vmatprep.subr.mxu0 0.0
    %589 = vmatpush1.msra.mxu0 %v88
    %590 = vmatprep.subr.mxu0 0.0
    %591 = vmatpush1.msra.mxu0 %v87
    %592 = vmatprep.subr.mxu0 0.0
    %593 = vmatpush1.msra.mxu0 %v86
    %594 = vmatprep.subr.mxu0 0.0
    %595 = vmatpush1.msra.mxu0 %v85
    %596 = vmatprep.subr.mxu0 0.0
    %597 = vmatpush1.msra.mxu0 %v84
    %598 = vmatprep.subr.mxu0 0.0
    %599 = vmatpush1.msra.mxu0 %v83
    %600 = vmatprep.subr.mxu0 0.0
    %601 = vmatpush1.msra.mxu0 %v82
    %602 = vmatprep.subr.mxu0 0.0
    %603 = vmatpush2.msra.mxu0 0.0
    %604 = vmatprep.subr.mxu0 0.0
    %605 = vmatpush2.msra.mxu0 0.0
    %606 = vmatprep.subr.mxu0 0.0
    %607 = vmatpush2.msra.mxu0 0.0
    %608 = vmatprep.subr.mxu0 0.0
    %609 = vmatpush2.msra.mxu0 0.0
    %610 = vmatprep.subr.mxu0 0.0
    %611 = vmatpush2.msra.mxu0 0.0
    %612 = vmatprep.subr.mxu0 0.0
    %613 = vmatpush2.msra.mxu0 0.0
    %614 = vmatprep.subr.mxu0 0.0
    %615 = vmatpush2.msra.mxu0 0.0
    %616 = vmatprep.subr.mxu0 0.0
    %617 = vmatpush2.msra.mxu0 0.0
    %618 = vmatprep.subr.mxu0 0.0
    %619 = vmatpush2.msra.mxu0 0.0
    %620 = vmatprep.subr.mxu0 0.0
    %621 = vmatpush2.msra.mxu0 0.0
    %622 = vmatprep.subr.mxu0 0.0
    %623 = vmatpush2.msra.mxu0 0.0
    %624 = vmatprep.subr.mxu0 0.0
    %625 = vmatpush2.msra.mxu0 0.0
    %626 = vmatprep.subr.mxu0 0.0
    %627 = vmatpush2.msra.mxu0 0.0
    %628 = vmatprep.subr.mxu0 0.0
    %629 = vmatpush2.msra.mxu0 0.0
    %630 = vmatprep.subr.mxu0 0.0
    %631 = vmatpush2.msra.mxu0 0.0
    %632 = vmatprep.subr.mxu0 0.0
    %633 = vmatpush2.msra.mxu0 0.0
    %634 = vmatprep.mubr.f32.mxu0 0.0
    %635 = vmatmul.mubr.f32.gmra.mxu0 %v567
    %v636 = vpop.f32.mrf.mxu0
    %v637 = vadd.f32 %v122, %v636
    %v638 = vpop.f32.mrf.mxu0
    %639 = vdwg.mxu0
    %v640 = vtanh.pop %v637
    %641 = vmatprep.subr.mxu0 0.0
    %642 = vmatpush1.msra.mxu0 %v113
    %643 = vmatprep.subr.mxu0 0.0
    %644 = vmatpush1.msra.mxu0 %v112
    %645 = vmatprep.subr.mxu0 0.0
    %646 = vmatpush1.msra.mxu0 %v111
    %647 = vmatprep.subr.mxu0 0.0
    %648 = vmatpush1.msra.mxu0 %v110
    %649 = vmatprep.subr.mxu0 0.0
    %650 = vmatpush1.msra.mxu0 %v109
    %651 = vmatprep.subr.mxu0 0.0
    %652 = vmatpush1.msra.mxu0 %v108
    %653 = vmatprep.subr.mxu0 0.0
    %654 = vmatpush1.msra.mxu0 %v107
    %655 = vmatprep.subr.mxu0 0.0
    %656 = vmatpush1.msra.mxu0 %v106
    %657 = vmatprep.subr.mxu0 0.0
    %658 = vmatpush1.msra.mxu0 %v105
    %659 = vmatprep.subr.mxu0 0.0
    %660 = vmatpush1.msra.mxu0 %v104
    %661 = vmatprep.subr.mxu0 0.0
    %662 = vmatpush1.msra.mxu0 %v103
    %663 = vmatprep.subr.mxu0 0.0
    %664 = vmatpush1.msra.mxu0 %v102
    %665 = vmatprep.subr.mxu0 0.0
    %666 = vmatpush1.msra.mxu0 %v101
    %667 = vmatprep.subr.mxu0 0.0
    %668 = vmatpush1.msra.mxu0 %v100
    %669 = vmatprep.subr.mxu0 0.0
    %670 = vmatpush1.msra.mxu0 %v99
    %671 = vmatprep.subr.mxu0 0.0
    %672 = vmatpush1.msra.mxu0 %v98
    %673 = vmatprep.subr.mxu0 0.0
    %674 = vmatpush2.msra.mxu0 0.0
    %675 = vmatprep.subr.mxu0 0.0
    %676 = vmatpush2.msra.mxu0 0.0
    %677 = vmatprep.subr.mxu0 0.0
    %678 = vmatpush2.msra.mxu0 0.0
    %679 = vmatprep.subr.mxu0 0.0
    %680 = vmatpush2.msra.mxu0 0.0
    %681 = vmatprep.subr.mxu0 0.0
    %682 = vmatpush2.msra.mxu0 0.0
    %683 = vmatprep.subr.mxu0 0.0
    %684 = vmatpush2.msra.mxu0 0.0
    %685 = vmatprep.subr.mxu0 0.0
    %686 = vmatpush2.msra.mxu0 0.0
    %687 = vmatprep.subr.mxu0 0.0
    %688 = vmatpush2.msra.mxu0 0.0
    %689 = vmatprep.subr.mxu0 0.0
    %690 = vmatpush2.msra.mxu0 0.0
    %691 = vmatprep.subr.mxu0 0.0
    %692 = vmatpush2.msra.mxu0 0.0
    %693 = vmatprep.subr.mxu0 0.0
    %694 = vmatpush2.msra.mxu0 0.0
    %695 = vmatprep.subr.mxu0 0.0
    %696 = vmatpush2.msra.mxu0 0.0
    %697 = vmatprep.subr.mxu0 0.0
    %698 = vmatpush2.msra.mxu0 0.0
    %699 = vmatprep.subr.mxu0 0.0
    %700 = vmatpush2.msra.mxu0 0.0
    %701 = vmatprep.subr.mxu0 0.0
    %702 = vmatpush2.msra.mxu0 0.0
    %703 = vmatprep.subr.mxu0 0.0
    %704 = vmatpush2.msra.mxu0 0.0
    %705 = vmatprep.mubr.f32.mxu0 0.0
    %706 = vmatmul.mubr.f32.gmra.mxu0 %v640
    %v707 = vpop.f32.mrf.mxu0
    %v708 = vadd.f32 %v199, %v707
    %v709 = vpop.f32.mrf.mxu0
    %710 = vdwg.mxu0
    %v711 = vmul.f32 %v567, %v271
    %v712 = vmul.f32 %v708, %v273
    %v713 = vadd.f32 %v711, %v712
    %s714 = scalar_lea.vmem [#allocation11], 32
    %715 = vst [vmem:[%s714] sm:$0xff] %v713
    %716 = vmatprep.subr.mxu0 0.0
    %717 = vmatpush1.msra.mxu0 %v97
    %718 = vmatprep.subr.mxu0 0.0
    %719 = vmatpush1.msra.mxu0 %v96
    %720 = vmatprep.subr.mxu0 0.0
    %721 = vmatpush1.msra.mxu0 %v95
    %722 = vmatprep.subr.mxu0 0.0
    %723 = vmatpush1.msra.mxu0 %v94
    %724 = vmatprep.subr.mxu0 0.0
    %725 = vmatpush1.msra.mxu0 %v93
    %726 = vmatprep.subr.mxu0 0.0
    %727 = vmatpush1.msra.mxu0 %v92
    %728 = vmatprep.subr.mxu0 0.0
    %729 = vmatpush1.msra.mxu0 %v91
    %730 = vmatprep.subr.mxu0 0.0
    %731 = vmatpush1.msra.mxu0 %v90
    %732 = vmatprep.subr.mxu0 0.0
    %733 = vmatpush1.msra.mxu0 %v89
    %734 = vmatprep.subr.mxu0 0.0
    %735 = vmatpush1.msra.mxu0 %v88
    %736 = vmatprep.subr.mxu0 0.0
    %737 = vmatpush1.msra.mxu0 %v87
    %738 = vmatprep.subr.mxu0 0.0
    %739 = vmatpush1.msra.mxu0 %v86
    %740 = vmatprep.subr.mxu0 0.0
    %741 = vmatpush1.msra.mxu0 %v85
    %742 = vmatprep.subr.mxu0 0.0
    %743 = vmatpush1.msra.mxu0 %v84
    %744 = vmatprep.subr.mxu0 0.0
    %745 = vmatpush1.msra.mxu0 %v83
    %746 = vmatprep.subr.mxu0 0.0
    %747 = vmatpush1.msra.mxu0 %v82
    %748 = vmatprep.subr.mxu0 0.0
    %749 = vmatpush2.msra.mxu0 0.0
    %750 = vmatprep.subr.mxu0 0.0
    %751 = vmatpush2.msra.mxu0 0.0
    %752 = vmatprep.subr.mxu0 0.0
    %753 = vmatpush2.msra.mxu0 0.0
    %754 = vmatprep.subr.mxu0 0.0
    %755 = vmatpush2.msra.mxu0 0.0
    %756 = vmatprep.subr.mxu0 0.0
    %757 = vmatpush2.msra.mxu0 0.0
    %758 = vmatprep.subr.mxu0 0.0
    %759 = vmatpush2.msra.mxu0 0.0
    %760 = vmatprep.subr.mxu0 0.0
    %761 = vmatpush2.msra.mxu0 0.0
    %762 = vmatprep.subr.mxu0 0.0
    %763 = vmatpush2.msra.mxu0 0.0
    %764 = vmatprep.subr.mxu0 0.0
    %765 = vmatpush2.msra.mxu0 0.0
    %766 = vmatprep.subr.mxu0 0.0
    %767 = vmatpush2.msra.mxu0 0.0
    %768 = vmatprep.subr.mxu0 0.0
    %769 = vmatpush2.msra.mxu0 0.0
    %770 = vmatprep.subr.mxu0 0.0
    %771 = vmatpush2.msra.mxu0 0.0
    %772 = vmatprep.subr.mxu0 0.0
    %773 = vmatpush2.msra.mxu0 0.0
    %774 = vmatprep.subr.mxu0 0.0
    %775 = vmatpush2.msra.mxu0 0.0
    %776 = vmatprep.subr.mxu0 0.0
    %777 = vmatpush2.msra.mxu0 0.0
    %778 = vmatprep.subr.mxu0 0.0
    %779 = vmatpush2.msra.mxu0 0.0
    %780 = vmatprep.mubr.f32.mxu0 0.0
    %781 = vmatmul.mubr.f32.gmra.mxu0 %v713
    %v782 = vpop.f32.mrf.mxu0
    %v783 = vadd.f32 %v122, %v782
    %v784 = vpop.f32.mrf.mxu0
    %785 = vdwg.mxu0
    %v786 = vtanh.pop %v783
    %787 = vmatprep.subr.mxu0 0.0
    %788 = vmatpush1.msra.mxu0 %v113
    %789 = vmatprep.subr.mxu0 0.0
    %790 = vmatpush1.msra.mxu0 %v112
    %791 = vmatprep.subr.mxu0 0.0
    %792 = vmatpush1.msra.mxu0 %v111
    %793 = vmatprep.subr.mxu0 0.0
    %794 = vmatpush1.msra.mxu0 %v110
    %795 = vmatprep.subr.mxu0 0.0
    %796 = vmatpush1.msra.mxu0 %v109
    %797 = vmatprep.subr.mxu0 0.0
    %798 = vmatpush1.msra.mxu0 %v108
    %799 = vmatprep.subr.mxu0 0.0
    %800 = vmatpush1.msra.mxu0 %v107
    %801 = vmatprep.subr.mxu0 0.0
    %802 = vmatpush1.msra.mxu0 %v106
    %803 = vmatprep.subr.mxu0 0.0
    %804 = vmatpush1.msra.mxu0 %v105
    %805 = vmatprep.subr.mxu0 0.0
    %806 = vmatpush1.msra.mxu0 %v104
    %807 = vmatprep.subr.mxu0 0.0
    %808 = vmatpush1.msra.mxu0 %v103
    %809 = vmatprep.subr.mxu0 0.0
    %810 = vmatpush1.msra.mxu0 %v102
    %811 = vmatprep.subr.mxu0 0.0
    %812 = vmatpush1.msra.mxu0 %v101
    %813 = vmatprep.subr.mxu0 0.0
    %814 = vmatpush1.msra.mxu0 %v100
    %815 = vmatprep.subr.mxu0 0.0
    %816 = vmatpush1.msra.mxu0 %v99
    %817 = vmatprep.subr.mxu0 0.0
    %818 = vmatpush1.msra.mxu0 %v98
    %819 = vmatprep.subr.mxu0 0.0
    %820 = vmatpush2.msra.mxu0 0.0
    %821 = vmatprep.subr.mxu0 0.0
    %822 = vmatpush2.msra.mxu0 0.0
    %823 = vmatprep.subr.mxu0 0.0
    %824 = vmatpush2.msra.mxu0 0.0
    %825 = vmatprep.subr.mxu0 0.0
    %826 = vmatpush2.msra.mxu0 0.0
    %827 = vmatprep.subr.mxu0 0.0
    %828 = vmatpush2.msra.mxu0 0.0
    %829 = vmatprep.subr.mxu0 0.0
    %830 = vmatpush2.msra.mxu0 0.0
    %831 = vmatprep.subr.mxu0 0.0
    %832 = vmatpush2.msra.mxu0 0.0
    %833 = vmatprep.subr.mxu0 0.0
    %834 = vmatpush2.msra.mxu0 0.0
    %835 = vmatprep.subr.mxu0 0.0
    %836 = vmatpush2.msra.mxu0 0.0
    %837 = vmatprep.subr.mxu0 0.0
    %838 = vmatpush2.msra.mxu0 0.0
    %839 = vmatprep.subr.mxu0 0.0
    %840 = vmatpush2.msra.mxu0 0.0
    %841 = vmatprep.subr.mxu0 0.0
    %842 = vmatpush2.msra.mxu0 0.0
    %843 = vmatprep.subr.mxu0 0.0
    %844 = vmatpush2.msra.mxu0 0.0
    %845 = vmatprep.subr.mxu0 0.0
    %846 = vmatpush2.msra.mxu0 0.0
    %847 = vmatprep.subr.mxu0 0.0
    %848 = vmatpush2.msra.mxu0 0.0
    %849 = vmatprep.subr.mxu0 0.0
    %850 = vmatpush2.msra.mxu0 0.0
    %851 = vmatprep.mubr.f32.mxu0 0.0
    %852 = vmatmul.mubr.f32.gmra.mxu0 %v786
    %v853 = vpop.f32.mrf.mxu0
    %v854 = vadd.f32 %v199, %v853
    %v855 = vpop.f32.mrf.mxu0
    %856 = vdwg.mxu0
    %v857 = vmul.f32 %v713, %v271
    %v858 = vmul.f32 %v854, %v273
    %v859 = vadd.f32 %v857, %v858
    %s860 = scalar_lea.vmem [#allocation11], 40
    %861 = vst [vmem:[%s860] sm:$0xff] %v859
    %862 = vmatprep.subr.mxu0 0.0
    %863 = vmatpush1.msra.mxu0 %v97
    %864 = vmatprep.subr.mxu0 0.0
    %865 = vmatpush1.msra.mxu0 %v96
    %866 = vmatprep.subr.mxu0 0.0
    %867 = vmatpush1.msra.mxu0 %v95
    %868 = vmatprep.subr.mxu0 0.0
    %869 = vmatpush1.msra.mxu0 %v94
    %870 = vmatprep.subr.mxu0 0.0
    %871 = vmatpush1.msra.mxu0 %v93
    %872 = vmatprep.subr.mxu0 0.0
    %873 = vmatpush1.msra.mxu0 %v92
    %874 = vmatprep.subr.mxu0 0.0
    %875 = vmatpush1.msra.mxu0 %v91
    %876 = vmatprep.subr.mxu0 0.0
    %877 = vmatpush1.msra.mxu0 %v90
    %878 = vmatprep.subr.mxu0 0.0
    %879 = vmatpush1.msra.mxu0 %v89
    %880 = vmatprep.subr.mxu0 0.0
    %881 = vmatpush1.msra.mxu0 %v88
    %882 = vmatprep.subr.mxu0 0.0
    %883 = vmatpush1.msra.mxu0 %v87
    %884 = vmatprep.subr.mxu0 0.0
    %885 = vmatpush1.msra.mxu0 %v86
    %886 = vmatprep.subr.mxu0 0.0
    %887 = vmatpush1.msra.mxu0 %v85
    %888 = vmatprep.subr.mxu0 0.0
    %889 = vmatpush1.msra.mxu0 %v84
    %890 = vmatprep.subr.mxu0 0.0
    %891 = vmatpush1.msra.mxu0 %v83
    %892 = vmatprep.subr.mxu0 0.0
    %893 = vmatpush1.msra.mxu0 %v82
    %894 = vmatprep.subr.mxu0 0.0
    %895 = vmatpush2.msra.mxu0 0.0
    %896 = vmatprep.subr.mxu0 0.0
    %897 = vmatpush2.msra.mxu0 0.0
    %898 = vmatprep.subr.mxu0 0.0
    %899 = vmatpush2.msra.mxu0 0.0
    %900 = vmatprep.subr.mxu0 0.0
    %901 = vmatpush2.msra.mxu0 0.0
    %902 = vmatprep.subr.mxu0 0.0
    %903 = vmatpush2.msra.mxu0 0.0
    %904 = vmatprep.subr.mxu0 0.0
    %905 = vmatpush2.msra.mxu0 0.0
    %906 = vmatprep.subr.mxu0 0.0
    %907 = vmatpush2.msra.mxu0 0.0
    %908 = vmatprep.subr.mxu0 0.0
    %909 = vmatpush2.msra.mxu0 0.0
    %910 = vmatprep.subr.mxu0 0.0
    %911 = vmatpush2.msra.mxu0 0.0
    %912 = vmatprep.subr.mxu0 0.0
    %913 = vmatpush2.msra.mxu0 0.0
    %914 = vmatprep.subr.mxu0 0.0
    %915 = vmatpush2.msra.mxu0 0.0
    %916 = vmatprep.subr.mxu0 0.0
    %917 = vmatpush2.msra.mxu0 0.0
    %918 = vmatprep.subr.mxu0 0.0
    %919 = vmatpush2.msra.mxu0 0.0
    %920 = vmatprep.subr.mxu0 0.0
    %921 = vmatpush2.msra.mxu0 0.0
    %922 = vmatprep.subr.mxu0 0.0
    %923 = vmatpush2.msra.mxu0 0.0
    %924 = vmatprep.subr.mxu0 0.0
    %925 = vmatpush2.msra.mxu0 0.0
    %926 = vmatprep.mubr.f32.mxu0 0.0
    %927 = vmatmul.mubr.f32.gmra.mxu0 %v859
    %v928 = vpop.f32.mrf.mxu0
    %v929 = vadd.f32 %v122, %v928
    %v930 = vpop.f32.mrf.mxu0
    %931 = vdwg.mxu0
    %v932 = vtanh.pop %v929
    %933 = vmatprep.subr.mxu0 0.0
    %934 = vmatpush1.msra.mxu0 %v113
    %935 = vmatprep.subr.mxu0 0.0
    %936 = vmatpush1.msra.mxu0 %v112
    %937 = vmatprep.subr.mxu0 0.0
    %938 = vmatpush1.msra.mxu0 %v111
    %939 = vmatprep.subr.mxu0 0.0
    %940 = vmatpush1.msra.mxu0 %v110
    %941 = vmatprep.subr.mxu0 0.0
    %942 = vmatpush1.msra.mxu0 %v109
    %943 = vmatprep.subr.mxu0 0.0
    %944 = vmatpush1.msra.mxu0 %v108
    %945 = vmatprep.subr.mxu0 0.0
    %946 = vmatpush1.msra.mxu0 %v107
    %947 = vmatprep.subr.mxu0 0.0
    %948 = vmatpush1.msra.mxu0 %v106
    %949 = vmatprep.subr.mxu0 0.0
    %950 = vmatpush1.msra.mxu0 %v105
    %951 = vmatprep.subr.mxu0 0.0
    %952 = vmatpush1.msra.mxu0 %v104
    %953 = vmatprep.subr.mxu0 0.0
    %954 = vmatpush1.msra.mxu0 %v103
    %955 = vmatprep.subr.mxu0 0.0
    %956 = vmatpush1.msra.mxu0 %v102
    %957 = vmatprep.subr.mxu0 0.0
    %958 = vmatpush1.msra.mxu0 %v101
    %959 = vmatprep.subr.mxu0 0.0
    %960 = vmatpush1.msra.mxu0 %v100
    %961 = vmatprep.subr.mxu0 0.0
    %962 = vmatpush1.msra.mxu0 %v99
    %963 = vmatprep.subr.mxu0 0.0
    %964 = vmatpush1.msra.mxu0 %v98
    %965 = vmatprep.subr.mxu0 0.0
    %966 = vmatpush2.msra.mxu0 0.0
    %967 = vmatprep.subr.mxu0 0.0
    %968 = vmatpush2.msra.mxu0 0.0
    %969 = vmatprep.subr.mxu0 0.0
    %970 = vmatpush2.msra.mxu0 0.0
    %971 = vmatprep.subr.mxu0 0.0
    %972 = vmatpush2.msra.mxu0 0.0
    %973 = vmatprep.subr.mxu0 0.0
    %974 = vmatpush2.msra.mxu0 0.0
    %975 = vmatprep.subr.mxu0 0.0
    %976 = vmatpush2.msra.mxu0 0.0
    %977 = vmatprep.subr.mxu0 0.0
    %978 = vmatpush2.msra.mxu0 0.0
    %979 = vmatprep.subr.mxu0 0.0
    %980 = vmatpush2.msra.mxu0 0.0
    %981 = vmatprep.subr.mxu0 0.0
    %982 = vmatpush2.msra.mxu0 0.0
    %983 = vmatprep.subr.mxu0 0.0
    %984 = vmatpush2.msra.mxu0 0.0
    %985 = vmatprep.subr.mxu0 0.0
    %986 = vmatpush2.msra.mxu0 0.0
    %987 = vmatprep.subr.mxu0 0.0
    %988 = vmatpush2.msra.mxu0 0.0
    %989 = vmatprep.subr.mxu0 0.0
    %990 = vmatpush2.msra.mxu0 0.0
    %991 = vmatprep.subr.mxu0 0.0
    %992 = vmatpush2.msra.mxu0 0.0
    %993 = vmatprep.subr.mxu0 0.0
    %994 = vmatpush2.msra.mxu0 0.0
    %995 = vmatprep.subr.mxu0 0.0
    %996 = vmatpush2.msra.mxu0 0.0
    %997 = vmatprep.mubr.f32.mxu0 0.0
    %998 = vmatmul.mubr.f32.gmra.mxu0 %v932
    %v999 = vpop.f32.mrf.mxu0
    %v1000 = vadd.f32 %v199, %v999
    %v1001 = vpop.f32.mrf.mxu0
    %1002 = vdwg.mxu0
    %v1003 = vmul.f32 %v859, %v271
    %v1004 = vmul.f32 %v1000, %v273
    %v1005 = vadd.f32 %v1003, %v1004
    %s1006 = scalar_lea.vmem [#allocation11], 48
    %1007 = vst [vmem:[%s1006] sm:$0xff] %v1005
    %1008 = vmatprep.subr.mxu0 0.0
    %1009 = vmatpush1.msra.mxu0 %v97
    %1010 = vmatprep.subr.mxu0 0.0
    %1011 = vmatpush1.msra.mxu0 %v96
    %1012 = vmatprep.subr.mxu0 0.0
    %1013 = vmatpush1.msra.mxu0 %v95
    %1014 = vmatprep.subr.mxu0 0.0
    %1015 = vmatpush1.msra.mxu0 %v94
    %1016 = vmatprep.subr.mxu0 0.0
    %1017 = vmatpush1.msra.mxu0 %v93
    %1018 = vmatprep.subr.mxu0 0.0
    %1019 = vmatpush1.msra.mxu0 %v92
    %1020 = vmatprep.subr.mxu0 0.0
    %1021 = vmatpush1.msra.mxu0 %v91
    %1022 = vmatprep.subr.mxu0 0.0
    %1023 = vmatpush1.msra.mxu0 %v90
    %1024 = vmatprep.subr.mxu0 0.0
    %1025 = vmatpush1.msra.mxu0 %v89
    %1026 = vmatprep.subr.mxu0 0.0
    %1027 = vmatpush1.msra.mxu0 %v88
    %1028 = vmatprep.subr.mxu0 0.0
    %1029 = vmatpush1.msra.mxu0 %v87
    %1030 = vmatprep.subr.mxu0 0.0
    %1031 = vmatpush1.msra.mxu0 %v86
    %1032 = vmatprep.subr.mxu0 0.0
    %1033 = vmatpush1.msra.mxu0 %v85
    %1034 = vmatprep.subr.mxu0 0.0
    %1035 = vmatpush1.msra.mxu0 %v84
    %1036 = vmatprep.subr.mxu0 0.0
    %1037 = vmatpush1.msra.mxu0 %v83
    %1038 = vmatprep.subr.mxu0 0.0
    %1039 = vmatpush1.msra.mxu0 %v82
    %1040 = vmatprep.subr.mxu0 0.0
    %1041 = vmatpush2.msra.mxu0 0.0
    %1042 = vmatprep.subr.mxu0 0.0
    %1043 = vmatpush2.msra.mxu0 0.0
    %1044 = vmatprep.subr.mxu0 0.0
    %1045 = vmatpush2.msra.mxu0 0.0
    %1046 = vmatprep.subr.mxu0 0.0
    %1047 = vmatpush2.msra.mxu0 0.0
    %1048 = vmatprep.subr.mxu0 0.0
    %1049 = vmatpush2.msra.mxu0 0.0
    %1050 = vmatprep.subr.mxu0 0.0
    %1051 = vmatpush2.msra.mxu0 0.0
    %1052 = vmatprep.subr.mxu0 0.0
    %1053 = vmatpush2.msra.mxu0 0.0
    %1054 = vmatprep.subr.mxu0 0.0
    %1055 = vmatpush2.msra.mxu0 0.0
    %1056 = vmatprep.subr.mxu0 0.0
    %1057 = vmatpush2.msra.mxu0 0.0
    %1058 = vmatprep.subr.mxu0 0.0
    %1059 = vmatpush2.msra.mxu0 0.0
    %1060 = vmatprep.subr.mxu0 0.0
    %1061 = vmatpush2.msra.mxu0 0.0
    %1062 = vmatprep.subr.mxu0 0.0
    %1063 = vmatpush2.msra.mxu0 0.0
    %1064 = vmatprep.subr.mxu0 0.0
    %1065 = vmatpush2.msra.mxu0 0.0
    %1066 = vmatprep.subr.mxu0 0.0
    %1067 = vmatpush2.msra.mxu0 0.0
    %1068 = vmatprep.subr.mxu0 0.0
    %1069 = vmatpush2.msra.mxu0 0.0
    %1070 = vmatprep.subr.mxu0 0.0
    %1071 = vmatpush2.msra.mxu0 0.0
    %1072 = vmatprep.mubr.f32.mxu0 0.0
    %1073 = vmatmul.mubr.f32.gmra.mxu0 %v1005
    %v1074 = vpop.f32.mrf.mxu0
    %v1075 = vadd.f32 %v122, %v1074
    %v1076 = vpop.f32.mrf.mxu0
    %1077 = vdwg.mxu0
    %v1078 = vtanh.pop %v1075
    %1079 = vmatprep.subr.mxu0 0.0
    %1080 = vmatpush1.msra.mxu0 %v113
    %1081 = vmatprep.subr.mxu0 0.0
    %1082 = vmatpush1.msra.mxu0 %v112
    %1083 = vmatprep.subr.mxu0 0.0
    %1084 = vmatpush1.msra.mxu0 %v111
    %1085 = vmatprep.subr.mxu0 0.0
    %1086 = vmatpush1.msra.mxu0 %v110
    %1087 = vmatprep.subr.mxu0 0.0
    %1088 = vmatpush1.msra.mxu0 %v109
    %1089 = vmatprep.subr.mxu0 0.0
    %1090 = vmatpush1.msra.mxu0 %v108
    %1091 = vmatprep.subr.mxu0 0.0
    %1092 = vmatpush1.msra.mxu0 %v107
    %1093 = vmatprep.subr.mxu0 0.0
    %1094 = vmatpush1.msra.mxu0 %v106
    %1095 = vmatprep.subr.mxu0 0.0
    %1096 = vmatpush1.msra.mxu0 %v105
    %1097 = vmatprep.subr.mxu0 0.0
    %1098 = vmatpush1.msra.mxu0 %v104
    %1099 = vmatprep.subr.mxu0 0.0
    %1100 = vmatpush1.msra.mxu0 %v103
    %1101 = vmatprep.subr.mxu0 0.0
    %1102 = vmatpush1.msra.mxu0 %v102
    %1103 = vmatprep.subr.mxu0 0.0
    %1104 = vmatpush1.msra.mxu0 %v101
    %1105 = vmatprep.subr.mxu0 0.0
    %1106 = vmatpush1.msra.mxu0 %v100
    %1107 = vmatprep.subr.mxu0 0.0
    %1108 = vmatpush1.msra.mxu0 %v99
    %1109 = vmatprep.subr.mxu0 0.0
    %1110 = vmatpush1.msra.mxu0 %v98
    %1111 = vmatprep.subr.mxu0 0.0
    %1112 = vmatpush2.msra.mxu0 0.0
    %1113 = vmatprep.subr.mxu0 0.0
    %1114 = vmatpush2.msra.mxu0 0.0
    %1115 = vmatprep.subr.mxu0 0.0
    %1116 = vmatpush2.msra.mxu0 0.0
    %1117 = vmatprep.subr.mxu0 0.0
    %1118 = vmatpush2.msra.mxu0 0.0
    %1119 = vmatprep.subr.mxu0 0.0
    %1120 = vmatpush2.msra.mxu0 0.0
    %1121 = vmatprep.subr.mxu0 0.0
    %1122 = vmatpush2.msra.mxu0 0.0
    %1123 = vmatprep.subr.mxu0 0.0
    %1124 = vmatpush2.msra.mxu0 0.0
    %1125 = vmatprep.subr.mxu0 0.0
    %1126 = vmatpush2.msra.mxu0 0.0
    %1127 = vmatprep.subr.mxu0 0.0
    %1128 = vmatpush2.msra.mxu0 0.0
    %1129 = vmatprep.subr.mxu0 0.0
    %1130 = vmatpush2.msra.mxu0 0.0
    %1131 = vmatprep.subr.mxu0 0.0
    %1132 = vmatpush2.msra.mxu0 0.0
    %1133 = vmatprep.subr.mxu0 0.0
    %1134 = vmatpush2.msra.mxu0 0.0
    %1135 = vmatprep.subr.mxu0 0.0
    %1136 = vmatpush2.msra.mxu0 0.0
    %1137 = vmatprep.subr.mxu0 0.0
    %1138 = vmatpush2.msra.mxu0 0.0
    %1139 = vmatprep.subr.mxu0 0.0
    %1140 = vmatpush2.msra.mxu0 0.0
    %1141 = vmatprep.subr.mxu0 0.0
    %1142 = vmatpush2.msra.mxu0 0.0
    %1143 = vmatprep.mubr.f32.mxu0 0.0
    %1144 = vmatmul.mubr.f32.gmra.mxu0 %v1078
    %v1145 = vpop.f32.mrf.mxu0
    %v1146 = vadd.f32 %v199, %v1145
    %v1147 = vpop.f32.mrf.mxu0
    %1148 = vdwg.mxu0
    %v1149 = vmul.f32 %v1005, %v271
    %v1150 = vmul.f32 %v1146, %v273
    %v1151 = vadd.f32 %v1149, %v1150
    %s1152 = scalar_lea.vmem [#allocation11], 56
    %1153 = vst [vmem:[%s1152] sm:$0xff] %v1151
    %1154 = vmatprep.subr.mxu0 0.0
    %1155 = vmatpush1.msra.mxu0 %v97
    %1156 = vmatprep.subr.mxu0 0.0
    %1157 = vmatpush1.msra.mxu0 %v96
    %1158 = vmatprep.subr.mxu0 0.0
    %1159 = vmatpush1.msra.mxu0 %v95
    %1160 = vmatprep.subr.mxu0 0.0
    %1161 = vmatpush1.msra.mxu0 %v94
    %1162 = vmatprep.subr.mxu0 0.0
    %1163 = vmatpush1.msra.mxu0 %v93
    %1164 = vmatprep.subr.mxu0 0.0
    %1165 = vmatpush1.msra.mxu0 %v92
    %1166 = vmatprep.subr.mxu0 0.0
    %1167 = vmatpush1.msra.mxu0 %v91
    %1168 = vmatprep.subr.mxu0 0.0
    %1169 = vmatpush1.msra.mxu0 %v90
    %1170 = vmatprep.subr.mxu0 0.0
    %1171 = vmatpush1.msra.mxu0 %v89
    %1172 = vmatprep.subr.mxu0 0.0
    %1173 = vmatpush1.msra.mxu0 %v88
    %1174 = vmatprep.subr.mxu0 0.0
    %1175 = vmatpush1.msra.mxu0 %v87
    %1176 = vmatprep.subr.mxu0 0.0
    %1177 = vmatpush1.msra.mxu0 %v86
    %1178 = vmatprep.subr.mxu0 0.0
    %1179 = vmatpush1.msra.mxu0 %v85
    %1180 = vmatprep.subr.mxu0 0.0
    %1181 = vmatpush1.msra.mxu0 %v84
    %1182 = vmatprep.subr.mxu0 0.0
    %1183 = vmatpush1.msra.mxu0 %v83
    %1184 = vmatprep.subr.mxu0 0.0
    %1185 = vmatpush1.msra.mxu0 %v82
    %1186 = vmatprep.subr.mxu0 0.0
    %1187 = vmatpush2.msra.mxu0 0.0
    %1188 = vmatprep.subr.mxu0 0.0
    %1189 = vmatpush2.msra.mxu0 0.0
    %1190 = vmatprep.subr.mxu0 0.0
    %1191 = vmatpush2.msra.mxu0 0.0
    %1192 = vmatprep.subr.mxu0 0.0
    %1193 = vmatpush2.msra.mxu0 0.0
    %1194 = vmatprep.subr.mxu0 0.0
    %1195 = vmatpush2.msra.mxu0 0.0
    %1196 = vmatprep.subr.mxu0 0.0
    %1197 = vmatpush2.msra.mxu0 0.0
    %1198 = vmatprep.subr.mxu0 0.0
    %1199 = vmatpush2.msra.mxu0 0.0
    %1200 = vmatprep.subr.mxu0 0.0
    %1201 = vmatpush2.msra.mxu0 0.0
    %1202 = vmatprep.subr.mxu0 0.0
    %1203 = vmatpush2.msra.mxu0 0.0
    %1204 = vmatprep.subr.mxu0 0.0
    %1205 = vmatpush2.msra.mxu0 0.0
    %1206 = vmatprep.subr.mxu0 0.0
    %1207 = vmatpush2.msra.mxu0 0.0
    %1208 = vmatprep.subr.mxu0 0.0
    %1209 = vmatpush2.msra.mxu0 0.0
    %1210 = vmatprep.subr.mxu0 0.0
    %1211 = vmatpush2.msra.mxu0 0.0
    %1212 = vmatprep.subr.mxu0 0.0
    %1213 = vmatpush2.msra.mxu0 0.0
    %1214 = vmatprep.subr.mxu0 0.0
    %1215 = vmatpush2.msra.mxu0 0.0
    %1216 = vmatprep.subr.mxu0 0.0
    %1217 = vmatpush2.msra.mxu0 0.0
    %1218 = vmatprep.mubr.f32.mxu0 0.0
    %1219 = vmatmul.mubr.f32.gmra.mxu0 %v1151
    %v1220 = vpop.f32.mrf.mxu0
    %v1221 = vadd.f32 %v122, %v1220
    %v1222 = vpop.f32.mrf.mxu0
    %1223 = vdwg.mxu0
    %v1224 = vtanh.pop %v1221
    %1225 = vmatprep.subr.mxu0 0.0
    %1226 = vmatpush1.msra.mxu0 %v113
    %1227 = vmatprep.subr.mxu0 0.0
    %1228 = vmatpush1.msra.mxu0 %v112
    %1229 = vmatprep.subr.mxu0 0.0
    %1230 = vmatpush1.msra.mxu0 %v111
    %1231 = vmatprep.subr.mxu0 0.0
    %1232 = vmatpush1.msra.mxu0 %v110
    %1233 = vmatprep.subr.mxu0 0.0
    %1234 = vmatpush1.msra.mxu0 %v109
    %1235 = vmatprep.subr.mxu0 0.0
    %1236 = vmatpush1.msra.mxu0 %v108
    %1237 = vmatprep.subr.mxu0 0.0
    %1238 = vmatpush1.msra.mxu0 %v107
    %1239 = vmatprep.subr.mxu0 0.0
    %1240 = vmatpush1.msra.mxu0 %v106
    %1241 = vmatprep.subr.mxu0 0.0
    %1242 = vmatpush1.msra.mxu0 %v105
    %1243 = vmatprep.subr.mxu0 0.0
    %1244 = vmatpush1.msra.mxu0 %v104
    %1245 = vmatprep.subr.mxu0 0.0
    %1246 = vmatpush1.msra.mxu0 %v103
    %1247 = vmatprep.subr.mxu0 0.0
    %1248 = vmatpush1.msra.mxu0 %v102
    %1249 = vmatprep.subr.mxu0 0.0
    %1250 = vmatpush1.msra.mxu0 %v101
    %1251 = vmatprep.subr.mxu0 0.0
    %1252 = vmatpush1.msra.mxu0 %v100
    %1253 = vmatprep.subr.mxu0 0.0
    %1254 = vmatpush1.msra.mxu0 %v99
    %1255 = vmatprep.subr.mxu0 0.0
    %1256 = vmatpush1.msra.mxu0 %v98
    %1257 = vmatprep.subr.mxu0 0.0
    %1258 = vmatpush2.msra.mxu0 0.0
    %1259 = vmatprep.subr.mxu0 0.0
    %1260 = vmatpush2.msra.mxu0 0.0
    %1261 = vmatprep.subr.mxu0 0.0
    %1262 = vmatpush2.msra.mxu0 0.0
    %1263 = vmatprep.subr.mxu0 0.0
    %1264 = vmatpush2.msra.mxu0 0.0
    %1265 = vmatprep.subr.mxu0 0.0
    %1266 = vmatpush2.msra.mxu0 0.0
    %1267 = vmatprep.subr.mxu0 0.0
    %1268 = vmatpush2.msra.mxu0 0.0
    %1269 = vmatprep.subr.mxu0 0.0
    %1270 = vmatpush2.msra.mxu0 0.0
    %1271 = vmatprep.subr.mxu0 0.0
    %1272 = vmatpush2.msra.mxu0 0.0
    %1273 = vmatprep.subr.mxu0 0.0
    %1274 = vmatpush2.msra.mxu0 0.0
    %1275 = vmatprep.subr.mxu0 0.0
    %1276 = vmatpush2.msra.mxu0 0.0
    %1277 = vmatprep.subr.mxu0 0.0
    %1278 = vmatpush2.msra.mxu0 0.0
    %1279 = vmatprep.subr.mxu0 0.0
    %1280 = vmatpush2.msra.mxu0 0.0
    %1281 = vmatprep.subr.mxu0 0.0
    %1282 = vmatpush2.msra.mxu0 0.0
    %1283 = vmatprep.subr.mxu0 0.0
    %1284 = vmatpush2.msra.mxu0 0.0
    %1285 = vmatprep.subr.mxu0 0.0
    %1286 = vmatpush2.msra.mxu0 0.0
    %1287 = vmatprep.subr.mxu0 0.0
    %1288 = vmatpush2.msra.mxu0 0.0
    %1289 = vmatprep.mubr.f32.mxu0 0.0
    %1290 = vmatmul.mubr.f32.gmra.mxu0 %v1224
    %v1291 = vpop.f32.mrf.mxu0
    %v1292 = vadd.f32 %v199, %v1291
    %v1293 = vpop.f32.mrf.mxu0
    %1294 = vdwg.mxu0
    %v1295 = vmul.f32 %v1151, %v271
    %v1296 = vmul.f32 %v1292, %v273
    %v1297 = vadd.f32 %v1295, %v1296
    %1298 = vst [vmem:[#allocation2] sm:$0xff] %v1297
    // Predicated region
    $region46: #{tpu_custom_call.1} parent=1 // pred_check
      _
    $region47: #{tpu_custom_call.1} parent=1 // pred_check_branch
      %1300 = sbr.rel (0) target = $region49
    $region48: #{tpu_custom_call.1} parent=1 // pred_region
      %s1302 = ssub.s32 1024, 1024
      %1303 = vsyncadd [#allocation5], %s1302
      %s1304 = sshll.u32 [#allocation11], 4
      %s1305 = int_to_ptr.vmem [resolvable:$true] %s1304
      %1310 = dma.vmem_to_hbm [thread:$0]  %s1305, 1024, %s6, [#allocation5], 128, 128, 8
    $region49: #{tpu_custom_call.1} parent=1 // pred_fallthru
      _
    // Predicated region
    $region50: #{tpu_custom_call.1} parent=1 // pred_check
      _
    $region51: #{tpu_custom_call.1} parent=1 // pred_check_branch
      %1312 = sbr.rel (0) target = $region53
    $region52: #{tpu_custom_call.1} parent=1 // pred_region
      %1313 = dma.done [#allocation5], 1024
    $region53: #{tpu_custom_call.1} parent=1 // pred_fallthru
      _
    %1314 = vsyncpa [#allocation4], 1
    %1315 = vsyncpa [#allocation9], 1
    %1316 = vsyncpa [#allocation5], 1
    %1317 = vsyncpa [#allocation6], 1

</llo_original>
